<compile_context>
chip_gen: v6e
topology: v6e:2x2x1
jax: 0.10.0
libtpu: 0.0.40
codegen_flags: <defaults>
</compile_context>

<pallas_src>
import functools

import jax
import jax.numpy as jnp
from jax.experimental import pallas as pl
from jax.experimental.pallas import tpu as pltpu


def _token_mixing_kernel(xq_ref, xkv_ref, wq_ref, wkv_ref, wp_ref, bp_ref,
                         out_ref, ctx_ref,
                         k_scr, v_scr, ctx_scr,
                         *, num_heads):
    """Grid = (batch, query_tile). One step = attention for one query tile."""
    H = num_heads
    N, hd = k_scr.shape[1], k_scr.shape[2]
    C = H * hd

    # ---- K / V projection: once per batch element (first query tile) -------
    # Single fused x @ Wkv matmul (native operand dtype, f32 accumulation);
    # results are parked per-head in VMEM scratch and reused by every q-tile.
    @pl.when(pl.program_id(1) == 0)
    def _():
        x_full = xkv_ref[0]                                    # (N, C)
        kv = jnp.dot(x_full, wkv_ref[...],
                     preferred_element_type=jnp.float32)       # (N, 2C)
        for h in range(H):
            k_scr[h] = kv[:, h * hd:(h + 1) * hd].astype(k_scr.dtype)
            v_scr[h] = kv[:, C + h * hd:C + (h + 1) * hd].astype(v_scr.dtype)

    # ---- Q projection for this query tile (scale already folded into Wq) ---
    q = jnp.dot(xq_ref[0], wq_ref[...],
                preferred_element_type=jnp.float32)            # (TQ, C), f32

    # ---- per-head attention; heads accumulated in a lane-dense scratch -----
    for h in range(H):
        qh = q[:, h * hd:(h + 1) * hd].astype(k_scr.dtype)     # (TQ, hd)
        kh = k_scr[h]                                          # (N, hd)
        vh = v_scr[h]                                          # (N, hd)
        # q @ k^T on the MXU (contract head_dim of both operands, no .T copy).
        s = jax.lax.dot_general(qh, kh, (((1,), (1,)), ((), ())),
                                preferred_element_type=jnp.float32)  # (TQ, N)
        s = s - jnp.max(s, axis=-1, keepdims=True)
        p = jnp.exp(s)
        # approximate reciprocal -> EUP slot, keeps the VALU free.
        p = p * pl.reciprocal(jnp.sum(p, axis=-1, keepdims=True), approx=True)
        ctx_h = jnp.dot(p.astype(vh.dtype), vh,
                        preferred_element_type=jnp.float32)    # (TQ, hd)
        ctx_scr[:, h * hd:(h + 1) * hd] = ctx_h

    # ---- ONE lane-dense store of concat-head context; proj from scratch ----
    ctx = ctx_scr[...]                                         # (TQ, C), f32
    ctx_ref[0] = ctx.astype(ctx_ref.dtype)
    out = jnp.dot(ctx.astype(wp_ref.dtype), wp_ref[...],
                  preferred_element_type=jnp.float32)
    out = out + bp_ref[...].astype(jnp.float32)
    out_ref[0] = out.astype(out_ref.dtype)


def token_mixing_pallas(x, wq, wkv, wproj, bproj, *, num_heads, block_q=None):
    """x: (B, N, C); wq: (C, C); wkv: (C, 2C); wproj: (C, C); bproj: (C,)."""
    B, N, C = x.shape
    assert C % num_heads == 0
    hd = C // num_heads
    scale = hd ** (-0.5)

    # Query-tile size: biggest 128-multiple that divides N, else the whole N.
    if block_q is None:
        block_q = N
        for cand in (1024, 512, 256, 128):
            if N >= cand and N % cand == 0:
                block_q = cand
                break
    assert N % block_q == 0, "query tile must divide N"
    n_q_tiles = N // block_q

    # Fold the softmax scale into Wq once (removes a (TQ, C) VPU mul per step).
    wq_scaled = (wq.astype(jnp.float32) * scale).astype(wq.dtype)
    bproj2d = bproj.reshape(1, C)

    kernel = functools.partial(_token_mixing_kernel, num_heads=num_heads)

    # Explicit scoped-VMEM budget derived from the chosen tiles (defaults are
    # far below physical); clamped to 64 MiB so it is also legal on v7x.
    itemsize = jnp.dtype(x.dtype).itemsize
    blocks = 2 * (block_q * C + N * C + 2 * block_q * C) * itemsize   # dbl-buffered I/O
    weights = 2 * (4 * C * C + C) * itemsize                          # dbl-buffered weights
    scratch = 2 * N * C * itemsize + block_q * C * 4                  # K/V + ctx scratch
    live = (2 * block_q * C + 2 * N * C + 3 * block_q * N) * 4        # f32 temporaries
    vmem_limit = int(max(16 * 1024 * 1024,
                         min(64 * 1024 * 1024,
                             2 * (blocks + weights + scratch + live))))

    out, ctx = pl.pallas_call(
        kernel,
        out_shape=(
            jax.ShapeDtypeStruct((B, N, C), x.dtype),   # projected output
            jax.ShapeDtypeStruct((B, N, C), x.dtype),   # concat-head attn@v
        ),
        grid_spec=pltpu.PrefetchScalarGridSpec(
            num_scalar_prefetch=0,
            grid=(B, n_q_tiles),
            in_specs=[
                pl.BlockSpec((1, block_q, C), lambda b, qi: (b, qi, 0)),  # x (q tile)
                pl.BlockSpec((1, N, C), lambda b, qi: (b, 0, 0)),         # x (full, for K/V)
                pl.BlockSpec((C, C), lambda b, qi: (0, 0)),               # Wq * scale
                pl.BlockSpec((C, 2 * C), lambda b, qi: (0, 0)),           # Wkv (fused, whole)
                pl.BlockSpec((C, C), lambda b, qi: (0, 0)),               # Wproj
                pl.BlockSpec((1, C), lambda b, qi: (0, 0)),               # bproj
            ],
            out_specs=[
                pl.BlockSpec((1, block_q, C), lambda b, qi: (b, qi, 0)),
                pl.BlockSpec((1, block_q, C), lambda b, qi: (b, qi, 0)),
            ],
            scratch_shapes=[
                pltpu.VMEM((num_heads, N, hd), x.dtype),    # K, per head
                pltpu.VMEM((num_heads, N, hd), x.dtype),    # V, per head
                pltpu.VMEM((block_q, C), jnp.float32),      # ctx accumulator
            ],
        ),
        compiler_params=pltpu.CompilerParams(
            dimension_semantics=("parallel", "arbitrary"),
            vmem_limit_bytes=vmem_limit,
        ),
    )(x, x, wq_scaled, wkv, wproj, bproj2d)

    # Second PyTorch return value is attn @ v with shape (B, num_heads, N, hd)
    # -- a pure reshape/permute of ctx, done as JAX glue.
    attn_v = ctx.reshape(B, N, num_heads, hd).transpose(0, 2, 1, 3)
    return out, attn_v


def _reference(x, wq, wkv, wproj, bproj, *, num_heads):
    """Plain-JAX reference mirroring the PyTorch forward."""
    B, N, C = x.shape
    hd = C // num_heads
    scale = hd ** (-0.5)
    q = (x @ wq).reshape(B, N, num_heads, hd).transpose(0, 2, 1, 3)
    kv = (x @ wkv).reshape(B, N, 2, num_heads, hd).transpose(2, 0, 3, 1, 4)
    k, v = kv[0], kv[1]
    attn = (q * scale) @ jnp.swapaxes(k, -2, -1)
    attn = jax.nn.softmax(attn, axis=-1)
    ctx = attn @ v                                        # (B, H, N, hd)
    out = ctx.transpose(0, 2, 1, 3).reshape(B, N, C) @ wproj + bproj
    return out, ctx


def _trunc_normal(key, shape, std=0.02):
    # trunc_normal_ with std=0.02, clipped to +/- 2 std (timm default bounds).
    return std * jax.random.truncated_normal(key, -2.0, 2.0, shape, jnp.float32)


if __name__ == "__main__":
    B, N, C = 2, 16, 32          # tokens N = H*W = 4*4; dim = 32; 4 heads
    num_heads = 4

    root = jax.random.PRNGKey(0)
    kx, kq, kkv, kp = jax.random.split(root, 4)

    x = jax.random.normal(kx, (B, N, C), jnp.float32)
    # nn.Linear weights init trunc_normal(std=0.02); qkv_bias=False; proj bias=0.
    wq = _trunc_normal(kq, (C, C))
    wkv = _trunc_normal(kkv, (C, 2 * C))
    wproj = _trunc_normal(kp, (C, C))
    bproj = jnp.zeros((C,), jnp.float32)

    # block_q=8 exercises the query-tile grid axis (2 tiles/batch) and the
    # K/V-scratch carry across tiles even at this toy sequence length.
    out, attn_v = token_mixing_pallas(x, wq, wkv, wproj, bproj,
                                      num_heads=num_heads, block_q=8)
    jax.block_until_ready(out)
    jax.block_until_ready(attn_v)

    ref_out, ref_attn_v = _reference(x, wq, wkv, wproj, bproj,
                                     num_heads=num_heads)
    # Tolerances slightly loosened for the approximate (EUP) softmax reciprocal.
    assert jnp.allclose(out, ref_out, atol=5e-4, rtol=5e-3), \
        float(jnp.max(jnp.abs(out - ref_out)))
    assert jnp.allclose(attn_v, ref_attn_v, atol=5e-4, rtol=5e-3), \
        float(jnp.max(jnp.abs(attn_v - ref_attn_v)))

    print("KERNEL_OK")
</pallas_src>

<mosaic_0001>
module attributes {stable_mosaic.version = 11 : i64} {
  func.func @_token_mixing_kernel(%arg0: i32, %arg1: i32, %arg2: memref<1x8x32xf32, #tpu.memory_space<vmem>>, %arg3: memref<1x16x32xf32, #tpu.memory_space<vmem>>, %arg4: memref<32x32xf32, #tpu.memory_space<vmem>>, %arg5: memref<32x64xf32, #tpu.memory_space<vmem>>, %arg6: memref<32x32xf32, #tpu.memory_space<vmem>>, %arg7: memref<1x32xf32, #tpu.memory_space<vmem>>, %arg8: memref<1x8x32xf32, #tpu.memory_space<vmem>>, %arg9: memref<1x8x32xf32, #tpu.memory_space<vmem>>, %arg10: memref<4x16x8xf32, #tpu.memory_space<vmem>>, %arg11: memref<4x16x8xf32, #tpu.memory_space<vmem>>, %arg12: memref<8x32xf32, #tpu.memory_space<vmem>>) attributes {dimension_semantics = [#tpu.dimension_semantics<parallel>, #tpu.dimension_semantics<arbitrary>], iteration_bounds = array<i64: 2, 2>, scalar_prefetch = 0 : i64, scratch_operands = 3 : i64, tpu.core_type = #tpu.core_type<tc>, window_params = [{transform_indices = @transform_0, window_bounds = array<i64: 1, 8, 32>}, {transform_indices = @transform_1, window_bounds = array<i64: 1, 16, 32>}, {pipeline_mode = #tpu.pipeline_mode<synchronous>, transform_indices = @transform_2, window_bounds = array<i64: 32, 32>}, {pipeline_mode = #tpu.pipeline_mode<synchronous>, transform_indices = @transform_3, window_bounds = array<i64: 32, 64>}, {pipeline_mode = #tpu.pipeline_mode<synchronous>, transform_indices = @transform_4, window_bounds = array<i64: 32, 32>}, {pipeline_mode = #tpu.pipeline_mode<synchronous>, transform_indices = @transform_5, window_bounds = array<i64: 1, 32>}, {transform_indices = @transform_6, window_bounds = array<i64: 1, 8, 32>}, {transform_indices = @transform_7, window_bounds = array<i64: 1, 8, 32>}]} {
    %c0_i32 = arith.constant 0 : i32
    %0 = arith.cmpi eq, %arg1, %c0_i32 : i32
    %1 = arith.extui %0 : i1 to i32
    %c0_i32_0 = arith.constant 0 : i32
    %2 = arith.cmpi ne, %1, %c0_i32_0 : i32
    scf.if %2 {
      %c0_60 = arith.constant 0 : index
      %c0_61 = arith.constant 0 : index
      %c0_62 = arith.constant 0 : index
      %91 = vector.load %arg3[%c0_60, %c0_61, %c0_62] : memref<1x16x32xf32, #tpu.memory_space<vmem>>, vector<1x16x32xf32>
      %92 = vector.shape_cast %91 : vector<1x16x32xf32> to vector<16x32xf32>
      %c0_63 = arith.constant 0 : index
      %c0_64 = arith.constant 0 : index
      %93 = vector.load %arg5[%c0_63, %c0_64] : memref<32x64xf32, #tpu.memory_space<vmem>>, vector<32x64xf32>
      %cst_65 = arith.constant dense<0.000000e+00> : vector<16x64xf32>
      %94 = tpu.matmul %92, %93, %cst_65 {dimension_numbers = #tpu.dot_dimension_numbers<[1], [0], [0], [1], [0, 0, 1, 1], [], []>} : vector<16x32xf32>, vector<32x64xf32>, vector<16x64xf32> -> vector<16x64xf32>
      %95 = vector.extract_strided_slice %94 {offsets = [0, 0], sizes = [16, 8], strides = [1, 1]} : vector<16x64xf32> to vector<16x8xf32>
      %c0_66 = arith.constant 0 : index
      %c0_67 = arith.constant 0 : index
      %c0_68 = arith.constant 0 : index
      %96 = vector.load %arg10[%c0_66, %c0_67, %c0_68] : memref<4x16x8xf32, #tpu.memory_space<vmem>>, vector<1x16x8xf32>
      %97 = vector.shape_cast %96 : vector<1x16x8xf32> to vector<16x8xf32>
      %98 = vector.shape_cast %95 : vector<16x8xf32> to vector<1x16x8xf32>
      tpu.vector_store %arg10[%c0_66, %c0_67, %c0_68], %98 {strides = array<i32>} : memref<4x16x8xf32, #tpu.memory_space<vmem>>, vector<1x16x8xf32>,
      %99 = vector.extract_strided_slice %94 {offsets = [0, 32], sizes = [16, 8], strides = [1, 1]} : vector<16x64xf32> to vector<16x8xf32>
      %c0_69 = arith.constant 0 : index
      %c0_70 = arith.constant 0 : index
      %c0_71 = arith.constant 0 : index
      %100 = vector.load %arg11[%c0_69, %c0_70, %c0_71] : memref<4x16x8xf32, #tpu.memory_space<vmem>>, vector<1x16x8xf32>
      %101 = vector.shape_cast %100 : vector<1x16x8xf32> to vector<16x8xf32>
      %102 = vector.shape_cast %99 : vector<16x8xf32> to vector<1x16x8xf32>
      tpu.vector_store %arg11[%c0_69, %c0_70, %c0_71], %102 {strides = array<i32>} : memref<4x16x8xf32, #tpu.memory_space<vmem>>, vector<1x16x8xf32>,
      %103 = vector.extract_strided_slice %94 {offsets = [0, 8], sizes = [16, 8], strides = [1, 1]} : vector<16x64xf32> to vector<16x8xf32>
      %c1_72 = arith.constant 1 : index
      %c0_73 = arith.constant 0 : index
      %c0_74 = arith.constant 0 : index
      %104 = vector.load %arg10[%c1_72, %c0_73, %c0_74] : memref<4x16x8xf32, #tpu.memory_space<vmem>>, vector<1x16x8xf32>
      %105 = vector.shape_cast %104 : vector<1x16x8xf32> to vector<16x8xf32>
      %106 = vector.shape_cast %103 : vector<16x8xf32> to vector<1x16x8xf32>
      tpu.vector_store %arg10[%c1_72, %c0_73, %c0_74], %106 {strides = array<i32>} : memref<4x16x8xf32, #tpu.memory_space<vmem>>, vector<1x16x8xf32>,
      %107 = vector.extract_strided_slice %94 {offsets = [0, 40], sizes = [16, 8], strides = [1, 1]} : vector<16x64xf32> to vector<16x8xf32>
      %c1_75 = arith.constant 1 : index
      %c0_76 = arith.constant 0 : index
      %c0_77 = arith.constant 0 : index
      %108 = vector.load %arg11[%c1_75, %c0_76, %c0_77] : memref<4x16x8xf32, #tpu.memory_space<vmem>>, vector<1x16x8xf32>
      %109 = vector.shape_cast %108 : vector<1x16x8xf32> to vector<16x8xf32>
      %110 = vector.shape_cast %107 : vector<16x8xf32> to vector<1x16x8xf32>
      tpu.vector_store %arg11[%c1_75, %c0_76, %c0_77], %110 {strides = array<i32>} : memref<4x16x8xf32, #tpu.memory_space<vmem>>, vector<1x16x8xf32>,
      %111 = vector.extract_strided_slice %94 {offsets = [0, 16], sizes = [16, 8], strides = [1, 1]} : vector<16x64xf32> to vector<16x8xf32>
      %c2_78 = arith.constant 2 : index
      %c0_79 = arith.constant 0 : index
      %c0_80 = arith.constant 0 : index
      %112 = vector.load %arg10[%c2_78, %c0_79, %c0_80] : memref<4x16x8xf32, #tpu.memory_space<vmem>>, vector<1x16x8xf32>
      %113 = vector.shape_cast %112 : vector<1x16x8xf32> to vector<16x8xf32>
      %114 = vector.shape_cast %111 : vector<16x8xf32> to vector<1x16x8xf32>
      tpu.vector_store %arg10[%c2_78, %c0_79, %c0_80], %114 {strides = array<i32>} : memref<4x16x8xf32, #tpu.memory_space<vmem>>, vector<1x16x8xf32>,
      %115 = vector.extract_strided_slice %94 {offsets = [0, 48], sizes = [16, 8], strides = [1, 1]} : vector<16x64xf32> to vector<16x8xf32>
      %c2_81 = arith.constant 2 : index
      %c0_82 = arith.constant 0 : index
      %c0_83 = arith.constant 0 : index
      %116 = vector.load %arg11[%c2_81, %c0_82, %c0_83] : memref<4x16x8xf32, #tpu.memory_space<vmem>>, vector<1x16x8xf32>
      %117 = vector.shape_cast %116 : vector<1x16x8xf32> to vector<16x8xf32>
      %118 = vector.shape_cast %115 : vector<16x8xf32> to vector<1x16x8xf32>
      tpu.vector_store %arg11[%c2_81, %c0_82, %c0_83], %118 {strides = array<i32>} : memref<4x16x8xf32, #tpu.memory_space<vmem>>, vector<1x16x8xf32>,
      %119 = vector.extract_strided_slice %94 {offsets = [0, 24], sizes = [16, 8], strides = [1, 1]} : vector<16x64xf32> to vector<16x8xf32>
      %c3_84 = arith.constant 3 : index
      %c0_85 = arith.constant 0 : index
      %c0_86 = arith.constant 0 : index
      %120 = vector.load %arg10[%c3_84, %c0_85, %c0_86] : memref<4x16x8xf32, #tpu.memory_space<vmem>>, vector<1x16x8xf32>
      %121 = vector.shape_cast %120 : vector<1x16x8xf32> to vector<16x8xf32>
      %122 = vector.shape_cast %119 : vector<16x8xf32> to vector<1x16x8xf32>
      tpu.vector_store %arg10[%c3_84, %c0_85, %c0_86], %122 {strides = array<i32>} : memref<4x16x8xf32, #tpu.memory_space<vmem>>, vector<1x16x8xf32>,
      %123 = vector.extract_strided_slice %94 {offsets = [0, 56], sizes = [16, 8], strides = [1, 1]} : vector<16x64xf32> to vector<16x8xf32>
      %c3_87 = arith.constant 3 : index
      %c0_88 = arith.constant 0 : index
      %c0_89 = arith.constant 0 : index
      %124 = vector.load %arg11[%c3_87, %c0_88, %c0_89] : memref<4x16x8xf32, #tpu.memory_space<vmem>>, vector<1x16x8xf32>
      %125 = vector.shape_cast %124 : vector<1x16x8xf32> to vector<16x8xf32>
      %126 = vector.shape_cast %123 : vector<16x8xf32> to vector<1x16x8xf32>
      tpu.vector_store %arg11[%c3_87, %c0_88, %c0_89], %126 {strides = array<i32>} : memref<4x16x8xf32, #tpu.memory_space<vmem>>, vector<1x16x8xf32>,
    } else {
    }
    %c0 = arith.constant 0 : index
    %c0_1 = arith.constant 0 : index
    %c0_2 = arith.constant 0 : index
    %3 = vector.load %arg2[%c0, %c0_1, %c0_2] : memref<1x8x32xf32, #tpu.memory_space<vmem>>, vector<1x8x32xf32>
    %4 = vector.shape_cast %3 : vector<1x8x32xf32> to vector<8x32xf32>
    %c0_3 = arith.constant 0 : index
    %c0_4 = arith.constant 0 : index
    %5 = vector.load %arg4[%c0_3, %c0_4] : memref<32x32xf32, #tpu.memory_space<vmem>>, vector<32x32xf32>
    %cst = arith.constant dense<0.000000e+00> : vector<8x32xf32>
    %6 = tpu.matmul %4, %5, %cst {dimension_numbers = #tpu.dot_dimension_numbers<[1], [0], [0], [1], [0, 0, 1, 1], [], []>} : vector<8x32xf32>, vector<32x32xf32>, vector<8x32xf32> -> vector<8x32xf32>
    %7 = vector.extract_strided_slice %6 {offsets = [0, 0], sizes = [8, 8], strides = [1, 1]} : vector<8x32xf32> to vector<8x8xf32>
    %c0_5 = arith.constant 0 : index
    %c0_6 = arith.constant 0 : index
    %c0_7 = arith.constant 0 : index
    %8 = vector.load %arg10[%c0_5, %c0_6, %c0_7] : memref<4x16x8xf32, #tpu.memory_space<vmem>>, vector<1x16x8xf32>
    %9 = vector.shape_cast %8 : vector<1x16x8xf32> to vector<16x8xf32>
    %c0_8 = arith.constant 0 : index
    %c0_9 = arith.constant 0 : index
    %c0_10 = arith.constant 0 : index
    %10 = vector.load %arg11[%c0_8, %c0_9, %c0_10] : memref<4x16x8xf32, #tpu.memory_space<vmem>>, vector<1x16x8xf32>
    %11 = vector.shape_cast %10 : vector<1x16x8xf32> to vector<16x8xf32>
    %cst_11 = arith.constant dense<0.000000e+00> : vector<8x16xf32>
    %12 = tpu.matmul %7, %9, %cst_11 {dimension_numbers = #tpu.dot_dimension_numbers<[1], [1], [0], [0], [0, 0, 1, 0], [], []>} : vector<8x8xf32>, vector<16x8xf32>, vector<8x16xf32> -> vector<8x16xf32>
    %cst_12 = arith.constant dense<0xFF800000> : vector<8xf32>
    %13 = vector.multi_reduction <maximumf>, %12, %cst_12 [1] : vector<8x16xf32> to vector<8xf32>
    %14 = vector.shape_cast %13 : vector<8xf32> to vector<8x1xf32>
    %15 = vector.broadcast %14 : vector<8x1xf32> to vector<8x16xf32>
    %16 = arith.subf %12, %15 : vector<8x16xf32>
    %17 = math.exp %16 : vector<8x16xf32>
    %cst_13 = arith.constant dense<0.000000e+00> : vector<8xf32>
    %18 = vector.multi_reduction <add>, %17, %cst_13 [1] : vector<8x16xf32> to vector<8xf32>
    %19 = vector.shape_cast %18 : vector<8xf32> to vector<8x1xf32>
    %20 = tpu.reciprocal %19 {approx = true} : vector<8x1xf32> -> vector<8x1xf32>
    %21 = vector.broadcast %20 : vector<8x1xf32> to vector<8x16xf32>
    %22 = arith.mulf %17, %21 : vector<8x16xf32>
    %cst_14 = arith.constant dense<0.000000e+00> : vector<8x8xf32>
    %23 = tpu.matmul %22, %11, %cst_14 {dimension_numbers = #tpu.dot_dimension_numbers<[1], [0], [0], [1], [0, 0, 1, 1], [], []>} : vector<8x16xf32>, vector<16x8xf32>, vector<8x8xf32> -> vector<8x8xf32>
    %c0_15 = arith.constant 0 : index
    %c0_16 = arith.constant 0 : index
    %24 = vector.load %arg12[%c0_15, %c0_16] : memref<8x32xf32, #tpu.memory_space<vmem>>, vector<8x8xf32>
    tpu.vector_store %arg12[%c0_15, %c0_16], %23 {strides = array<i32>} : memref<8x32xf32, #tpu.memory_space<vmem>>, vector<8x8xf32>,
    %25 = vector.extract_strided_slice %6 {offsets = [0, 8], sizes = [8, 8], strides = [1, 1]} : vector<8x32xf32> to vector<8x8xf32>
    %c1 = arith.constant 1 : index
    %c0_17 = arith.constant 0 : index
    %c0_18 = arith.constant 0 : index
    %26 = vector.load %arg10[%c1, %c0_17, %c0_18] : memref<4x16x8xf32, #tpu.memory_space<vmem>>, vector<1x16x8xf32>
    %27 = vector.shape_cast %26 : vector<1x16x8xf32> to vector<16x8xf32>
    %c1_19 = arith.constant 1 : index
    %c0_20 = arith.constant 0 : index
    %c0_21 = arith.constant 0 : index
    %28 = vector.load %arg11[%c1_19, %c0_20, %c0_21] : memref<4x16x8xf32, #tpu.memory_space<vmem>>, vector<1x16x8xf32>
    %29 = vector.shape_cast %28 : vector<1x16x8xf32> to vector<16x8xf32>
    %cst_22 = arith.constant dense<0.000000e+00> : vector<8x16xf32>
    %30 = tpu.matmul %25, %27, %cst_22 {dimension_numbers = #tpu.dot_dimension_numbers<[1], [1], [0], [0], [0, 0, 1, 0], [], []>} : vector<8x8xf32>, vector<16x8xf32>, vector<8x16xf32> -> vector<8x16xf32>
    %cst_23 = arith.constant dense<0xFF800000> : vector<8xf32>
    %31 = vector.multi_reduction <maximumf>, %30, %cst_23 [1] : vector<8x16xf32> to vector<8xf32>
    %32 = vector.shape_cast %31 : vector<8xf32> to vector<8x1xf32>
    %33 = vector.broadcast %32 : vector<8x1xf32> to vector<8x16xf32>
    %34 = arith.subf %30, %33 : vector<8x16xf32>
    %35 = math.exp %34 : vector<8x16xf32>
    %cst_24 = arith.constant dense<0.000000e+00> : vector<8xf32>
    %36 = vector.multi_reduction <add>, %35, %cst_24 [1] : vector<8x16xf32> to vector<8xf32>
    %37 = vector.shape_cast %36 : vector<8xf32> to vector<8x1xf32>
    %38 = tpu.reciprocal %37 {approx = true} : vector<8x1xf32> -> vector<8x1xf32>
    %39 = vector.broadcast %38 : vector<8x1xf32> to vector<8x16xf32>
    %40 = arith.mulf %35, %39 : vector<8x16xf32>
    %cst_25 = arith.constant dense<0.000000e+00> : vector<8x8xf32>
    %41 = tpu.matmul %40, %29, %cst_25 {dimension_numbers = #tpu.dot_dimension_numbers<[1], [0], [0], [1], [0, 0, 1, 1], [], []>} : vector<8x16xf32>, vector<16x8xf32>, vector<8x8xf32> -> vector<8x8xf32>
    %c0_26 = arith.constant 0 : index
    %c8 = arith.constant 8 : index
    %42 = vector.load %arg12[%c0_26, %c8] : memref<8x32xf32, #tpu.memory_space<vmem>>, vector<8x8xf32>
    tpu.vector_store %arg12[%c0_26, %c8], %41 {strides = array<i32>} : memref<8x32xf32, #tpu.memory_space<vmem>>, vector<8x8xf32>,
    %43 = vector.extract_strided_slice %6 {offsets = [0, 16], sizes = [8, 8], strides = [1, 1]} : vector<8x32xf32> to vector<8x8xf32>
    %c2 = arith.constant 2 : index
    %c0_27 = arith.constant 0 : index
    %c0_28 = arith.constant 0 : index
    %44 = vector.load %arg10[%c2, %c0_27, %c0_28] : memref<4x16x8xf32, #tpu.memory_space<vmem>>, vector<1x16x8xf32>
    %45 = vector.shape_cast %44 : vector<1x16x8xf32> to vector<16x8xf32>
    %c2_29 = arith.constant 2 : index
    %c0_30 = arith.constant 0 : index
    %c0_31 = arith.constant 0 : index
    %46 = vector.load %arg11[%c2_29, %c0_30, %c0_31] : memref<4x16x8xf32, #tpu.memory_space<vmem>>, vector<1x16x8xf32>
    %47 = vector.shape_cast %46 : vector<1x16x8xf32> to vector<16x8xf32>
    %cst_32 = arith.constant dense<0.000000e+00> : vector<8x16xf32>
    %48 = tpu.matmul %43, %45, %cst_32 {dimension_numbers = #tpu.dot_dimension_numbers<[1], [1], [0], [0], [0, 0, 1, 0], [], []>} : vector<8x8xf32>, vector<16x8xf32>, vector<8x16xf32> -> vector<8x16xf32>
    %cst_33 = arith.constant dense<0xFF800000> : vector<8xf32>
    %49 = vector.multi_reduction <maximumf>, %48, %cst_33 [1] : vector<8x16xf32> to vector<8xf32>
    %50 = vector.shape_cast %49 : vector<8xf32> to vector<8x1xf32>
    %51 = vector.broadcast %50 : vector<8x1xf32> to vector<8x16xf32>
    %52 = arith.subf %48, %51 : vector<8x16xf32>
    %53 = math.exp %52 : vector<8x16xf32>
    %cst_34 = arith.constant dense<0.000000e+00> : vector<8xf32>
    %54 = vector.multi_reduction <add>, %53, %cst_34 [1] : vector<8x16xf32> to vector<8xf32>
    %55 = vector.shape_cast %54 : vector<8xf32> to vector<8x1xf32>
    %56 = tpu.reciprocal %55 {approx = true} : vector<8x1xf32> -> vector<8x1xf32>
    %57 = vector.broadcast %56 : vector<8x1xf32> to vector<8x16xf32>
    %58 = arith.mulf %53, %57 : vector<8x16xf32>
    %cst_35 = arith.constant dense<0.000000e+00> : vector<8x8xf32>
    %59 = tpu.matmul %58, %47, %cst_35 {dimension_numbers = #tpu.dot_dimension_numbers<[1], [0], [0], [1], [0, 0, 1, 1], [], []>} : vector<8x16xf32>, vector<16x8xf32>, vector<8x8xf32> -> vector<8x8xf32>
    %c0_36 = arith.constant 0 : index
    %c16 = arith.constant 16 : index
    %60 = vector.load %arg12[%c0_36, %c16] : memref<8x32xf32, #tpu.memory_space<vmem>>, vector<8x8xf32>
    tpu.vector_store %arg12[%c0_36, %c16], %59 {strides = array<i32>} : memref<8x32xf32, #tpu.memory_space<vmem>>, vector<8x8xf32>,
    %61 = vector.extract_strided_slice %6 {offsets = [0, 24], sizes = [8, 8], strides = [1, 1]} : vector<8x32xf32> to vector<8x8xf32>
    %c3 = arith.constant 3 : index
    %c0_37 = arith.constant 0 : index
    %c0_38 = arith.constant 0 : index
    %62 = vector.load %arg10[%c3, %c0_37, %c0_38] : memref<4x16x8xf32, #tpu.memory_space<vmem>>, vector<1x16x8xf32>
    %63 = vector.shape_cast %62 : vector<1x16x8xf32> to vector<16x8xf32>
    %c3_39 = arith.constant 3 : index
    %c0_40 = arith.constant 0 : index
    %c0_41 = arith.constant 0 : index
    %64 = vector.load %arg11[%c3_39, %c0_40, %c0_41] : memref<4x16x8xf32, #tpu.memory_space<vmem>>, vector<1x16x8xf32>
    %65 = vector.shape_cast %64 : vector<1x16x8xf32> to vector<16x8xf32>
    %cst_42 = arith.constant dense<0.000000e+00> : vector<8x16xf32>
    %66 = tpu.matmul %61, %63, %cst_42 {dimension_numbers = #tpu.dot_dimension_numbers<[1], [1], [0], [0], [0, 0, 1, 0], [], []>} : vector<8x8xf32>, vector<16x8xf32>, vector<8x16xf32> -> vector<8x16xf32>
    %cst_43 = arith.constant dense<0xFF800000> : vector<8xf32>
    %67 = vector.multi_reduction <maximumf>, %66, %cst_43 [1] : vector<8x16xf32> to vector<8xf32>
    %68 = vector.shape_cast %67 : vector<8xf32> to vector<8x1xf32>
    %69 = vector.broadcast %68 : vector<8x1xf32> to vector<8x16xf32>
    %70 = arith.subf %66, %69 : vector<8x16xf32>
    %71 = math.exp %70 : vector<8x16xf32>
    %cst_44 = arith.constant dense<0.000000e+00> : vector<8xf32>
    %72 = vector.multi_reduction <add>, %71, %cst_44 [1] : vector<8x16xf32> to vector<8xf32>
    %73 = vector.shape_cast %72 : vector<8xf32> to vector<8x1xf32>
    %74 = tpu.reciprocal %73 {approx = true} : vector<8x1xf32> -> vector<8x1xf32>
    %75 = vector.broadcast %74 : vector<8x1xf32> to vector<8x16xf32>
    %76 = arith.mulf %71, %75 : vector<8x16xf32>
    %cst_45 = arith.constant dense<0.000000e+00> : vector<8x8xf32>
    %77 = tpu.matmul %76, %65, %cst_45 {dimension_numbers = #tpu.dot_dimension_numbers<[1], [0], [0], [1], [0, 0, 1, 1], [], []>} : vector<8x16xf32>, vector<16x8xf32>, vector<8x8xf32> -> vector<8x8xf32>
    %c0_46 = arith.constant 0 : index
    %c24 = arith.constant 24 : index
    %78 = vector.load %arg12[%c0_46, %c24] : memref<8x32xf32, #tpu.memory_space<vmem>>, vector<8x8xf32>
    tpu.vector_store %arg12[%c0_46, %c24], %77 {strides = array<i32>} : memref<8x32xf32, #tpu.memory_space<vmem>>, vector<8x8xf32>,
    %c0_47 = arith.constant 0 : index
    %c0_48 = arith.constant 0 : index
    %79 = vector.load %arg12[%c0_47, %c0_48] : memref<8x32xf32, #tpu.memory_space<vmem>>, vector<8x32xf32>
    %c0_49 = arith.constant 0 : index
    %c0_50 = arith.constant 0 : index
    %c0_51 = arith.constant 0 : index
    %80 = vector.load %arg9[%c0_49, %c0_50, %c0_51] : memref<1x8x32xf32, #tpu.memory_space<vmem>>, vector<1x8x32xf32>
    %81 = vector.shape_cast %80 : vector<1x8x32xf32> to vector<8x32xf32>
    %82 = vector.shape_cast %79 : vector<8x32xf32> to vector<1x8x32xf32>
    tpu.vector_store %arg9[%c0_49, %c0_50, %c0_51], %82 {strides = array<i32>} : memref<1x8x32xf32, #tpu.memory_space<vmem>>, vector<1x8x32xf32>,
    %c0_52 = arith.constant 0 : index
    %c0_53 = arith.constant 0 : index
    %83 = vector.load %arg6[%c0_52, %c0_53] : memref<32x32xf32, #tpu.memory_space<vmem>>, vector<32x32xf32>
    %cst_54 = arith.constant dense<0.000000e+00> : vector<8x32xf32>
    %84 = tpu.matmul %79, %83, %cst_54 {dimension_numbers = #tpu.dot_dimension_numbers<[1], [0], [0], [1], [0, 0, 1, 1], [], []>} : vector<8x32xf32>, vector<32x32xf32>, vector<8x32xf32> -> vector<8x32xf32>
    %c0_55 = arith.constant 0 : index
    %c0_56 = arith.constant 0 : index
    %85 = vector.load %arg7[%c0_55, %c0_56] : memref<1x32xf32, #tpu.memory_space<vmem>>, vector<1x32xf32>
    %86 = vector.broadcast %85 : vector<1x32xf32> to vector<8x32xf32>
    %87 = arith.addf %84, %86 : vector<8x32xf32>
    %c0_57 = arith.constant 0 : index
    %c0_58 = arith.constant 0 : index
    %c0_59 = arith.constant 0 : index
    %88 = vector.load %arg8[%c0_57, %c0_58, %c0_59] : memref<1x8x32xf32, #tpu.memory_space<vmem>>, vector<1x8x32xf32>
    %89 = vector.shape_cast %88 : vector<1x8x32xf32> to vector<8x32xf32>
    %90 = vector.shape_cast %87 : vector<8x32xf32> to vector<1x8x32xf32>
    tpu.vector_store %arg8[%c0_57, %c0_58, %c0_59], %90 {strides = array<i32>} : memref<1x8x32xf32, #tpu.memory_space<vmem>>, vector<1x8x32xf32>,
    return
  }
  func.func @transform_0(%arg0: i32, %arg1: i32) -> (i32, i32, i32) {
    %c0_i32 = arith.constant 0 : i32
    %c0_i32_0 = arith.constant 0 : i32
    return %arg0, %arg1, %c0_i32 : i32, i32, i32
  }
  func.func @transform_1(%arg0: i32, %arg1: i32) -> (i32, i32, i32) {
    %c0_i32 = arith.constant 0 : i32
    %c0_i32_0 = arith.constant 0 : i32
    %c0_i32_1 = arith.constant 0 : i32
    return %arg0, %c0_i32, %c0_i32_0 : i32, i32, i32
  }
  func.func @transform_2(%arg0: i32, %arg1: i32) -> (i32, i32) {
    %c0_i32 = arith.constant 0 : i32
    %c0_i32_0 = arith.constant 0 : i32
    %c0_i32_1 = arith.constant 0 : i32
    return %c0_i32, %c0_i32_0 : i32, i32
  }
  func.func @transform_3(%arg0: i32, %arg1: i32) -> (i32, i32) {
    %c0_i32 = arith.constant 0 : i32
    %c0_i32_0 = arith.constant 0 : i32
    %c0_i32_1 = arith.constant 0 : i32
    return %c0_i32, %c0_i32_0 : i32, i32
  }
  func.func @transform_4(%arg0: i32, %arg1: i32) -> (i32, i32) {
    %c0_i32 = arith.constant 0 : i32
    %c0_i32_0 = arith.constant 0 : i32
    %c0_i32_1 = arith.constant 0 : i32
    return %c0_i32, %c0_i32_0 : i32, i32
  }
  func.func @transform_5(%arg0: i32, %arg1: i32) -> (i32, i32) {
    %c0_i32 = arith.constant 0 : i32
    %c0_i32_0 = arith.constant 0 : i32
    %c0_i32_1 = arith.constant 0 : i32
    return %c0_i32, %c0_i32_0 : i32, i32
  }
  func.func @transform_6(%arg0: i32, %arg1: i32) -> (i32, i32, i32) {
    %c0_i32 = arith.constant 0 : i32
    %c0_i32_0 = arith.constant 0 : i32
    return %arg0, %arg1, %c0_i32 : i32, i32, i32
  }
  func.func @transform_7(%arg0: i32, %arg1: i32) -> (i32, i32, i32) {
    %c0_i32 = arith.constant 0 : i32
    %c0_i32_0 = arith.constant 0 : i32
    return %arg0, %arg1, %c0_i32 : i32, i32, i32
  }
}

</mosaic_0001>

<llo_original>
// kernel: tpu_custom_call.1
$region0: #{tpu_custom_call.1}
  #allocation0 [shape = 'u32[]', space=smem, size = 0x4, offset = 0x4, fixed_abs, tag = 'smem constant byte address 0x4 - core index']
  #allocation1 [shape = 'u32[144,128]{1,0:T(1,128)}', space=vmem, size = 0x12000, scoped, tag = 'internal scratch']
  #allocation2 [shape = 'f32[4,16,8]{2,1,0:T(8,128)}', space=vmem, size = 0x8000, scoped, tag = 'scratch operand']
  #allocation3 [shape = 'f32[4,16,8]{2,1,0:T(8,128)}', space=vmem, size = 0x8000, scoped, tag = 'scratch operand']
  #allocation4 [shape = 'f32[8,32]{1,0:T(8,128)}', space=vmem, size = 0x1000, scoped, tag = 'scratch operand']
  %s0 = inlined_call_operand.hbm [shape: f32[2,16,32], index: 0, kind: input, shape index: {}]
  %s1 = inlined_call_operand.hbm [shape: f32[2,16,32], index: 1, kind: input, shape index: {}]
  %s2 = inlined_call_operand.hbm [shape: f32[32,32], index: 2, kind: input, shape index: {}]
  %s3 = inlined_call_operand.hbm [shape: f32[32,64], index: 3, kind: input, shape index: {}]
  %s4 = inlined_call_operand.hbm [shape: f32[32,32], index: 4, kind: input, shape index: {}]
  %s5 = inlined_call_operand.vmem [shape: f32[1,32], index: 5, kind: input, shape index: {}]
  %s6 = inlined_call_operand.hbm [shape: f32[2,16,32], index: 6, kind: output, shape index: {0}]
  %s7 = inlined_call_operand.hbm [shape: f32[2,16,32], index: 7, kind: output, shape index: {1}]
  %8 = xla_tuple %s6, %s7
  %s9 = sld [smem:[#allocation0]]
  $region89: #{tpu_custom_call.1} parent=0
    _
  %s11 = ssub.s32 1, %s9
  %s12 = scalar_select 0, %s11, %s9
  $region1: #{tpu_custom_call.1} parent=0
    #allocation5 [shape = 'u8[8192]{0}', space=vmem, size = 0x2000, scoped, tag = 'input window, operand 0']
    #allocation6 [shape = 's32[2]{0}', space=sflag, size = 0x8, scoped, tag = 'scoped memory for tpu_custom_call.1']
    #allocation7 [shape = 's32[2]{0}', space=sflag, size = 0x8, scoped, tag = 'scoped memory for tpu_custom_call.1']
    #allocation8 [shape = 'u8[16384]{0}', space=vmem, size = 0x4000, scoped, tag = 'input window, operand 1']
    #allocation9 [shape = 's32[2]{0}', space=sflag, size = 0x8, scoped, tag = 'scoped memory for tpu_custom_call.1']
    #allocation10 [shape = 'u8[16384]{0}', space=vmem, size = 0x4000, scoped, tag = 'input window, operand 2, single buffered']
    #allocation11 [shape = 'u8[16384]{0}', space=vmem, size = 0x4000, scoped, tag = 'input window, operand 3, single buffered']
    #allocation12 [shape = 's32[1]{0}', space=sflag, size = 0x4, scoped, tag = 'scoped memory for tpu_custom_call.1']
    #allocation13 [shape = 'u8[16384]{0}', space=vmem, size = 0x4000, scoped, tag = 'input window, operand 4, single buffered']
    #allocation14 [shape = 'u8[8192]{0}', space=vmem, size = 0x2000, scoped, tag = 'output window, operand 0']
    #allocation15 [shape = 'u8[8192]{0}', space=vmem, size = 0x2000, scoped, tag = 'output window, operand 1']
    #allocation16 [shape = 's32[2]{0}', space=sflag, size = 0x8, scoped, tag = 'scoped memory for tpu_custom_call.1']
    %13 = vsyncpa [#allocation6], 0
    %s14 = scalar_lea.sflag [#allocation6], 1
    %15 = vsyncpa %s14, 0
    %16 = vsyncpa [#allocation9], 0
    %s17 = scalar_lea.sflag [#allocation9], 1
    %18 = vsyncpa %s17, 0
    %19 = vsyncpa [#allocation12], 0
    %20 = vsyncpa [#allocation7], 0
    %s21 = scalar_lea.sflag [#allocation7], 1
    %22 = vsyncpa %s21, 0
    %23 = vsyncpa [#allocation16], 0
    %s24 = scalar_lea.sflag [#allocation16], 1
    %25 = vsyncpa %s24, 0
    loop: start=0, step=1, limit=6
    $region2: #{tpu_custom_call.1} parent=1 // loop_pre_header
      _
    $region3: #{tpu_custom_call.1} parent=1 // loop_header
      %s27 = sphi 0, %s31
      %p28 = scmp.ge.s32.totalorder %s27, 6
      %s34 = sphi 0, %s46
      %s35 = sphi 0, %s42
      %s36 = sphi 0, %s34
      %s37 = sphi 0, %s35
      %s38 = sphi 0, %s36
      %s39 = sphi 0, %s37
      %s51 = sphi 0, %s53
      %s54 = sphi 0, %s51
      %s55 = sphi 0, %s54
      %s71 = sphi 0, %s55
      %s77 = sphi 0, %s79
      %s80 = sphi 0, %s77
      %s81 = sphi 0, %s80
      %s97 = sphi 0, %s81
      %s101 = sphi 0, %s101
      %s103 = sphi 0, %s101
      %s104 = sphi 0, %s103
      %s118 = sphi 0, %s104
      %s122 = sphi 0, %s122
      %s124 = sphi 0, %s122
      %s125 = sphi 0, %s124
      %s139 = sphi 0, %s125
      %s143 = sphi 0, %s143
      %s145 = sphi 0, %s143
      %s146 = sphi 0, %s145
      %s160 = sphi 0, %s146
      %s164 = sphi 0, %s164
      %s166 = sphi 0, %s164
      %s167 = sphi 0, %s166
      %s181 = sphi 0, %s167
      %s189 = sphi 0, %s191
      %s192 = sphi 0, %s189
      %s193 = sphi 0, %s192
      %s209 = sphi 0, %s193
      %s217 = sphi 0, %s219
      %s220 = sphi 0, %s217
      %s221 = sphi 0, %s220
      %s237 = sphi 0, %s221
    $region4: #{tpu_custom_call.1} parent=1 // loop_header_branch
      %30 = sbr.rel (%p28) target = $region8
    $region5: #{tpu_custom_call.1} parent=1 // loop_body
      %s32 = ssub.s32 %s27, 1
      %s33 = ssub.s32 %s27, 2
      %s40 = sadd.s32 1, %s35
      %p41 = scmp.ge.s32.totalorder %s40, 2
      %s42 = scalar_select %p41, 0, %s40
      %s43 = sadd.s32 1, %s34
      %s44 = scalar_select %p41, %s43, %s34
      %p45 = scmp.ge.s32.totalorder %s44, 2
      %s46 = scalar_select %p45, 0, %s44
      %s47 = ssub.s32 %s34, %s46
      %s48 = ssub.s32 %s35, %s42
      %s49 = sor.u32 %s47, %s48
      %p50 = scmp.eq.s32.totalorder %s49, 0
      %s52 = sadd.s32 %s51, 1
      %s53 = scalar_select %p50, %s51, %s52
      %p56 = pneg %p50
      %p57 = scmp.eq.s32.totalorder %s27, 3
      %p58 = por %p56, %p57
      %p59 = scmp.ne.s32.totalorder %s51, %s54
      %p60 = scmp.eq.s32.totalorder %s27, 0
      %p61 = por %p59, %p60
      %p62 = scmp.ne.s32.totalorder %s51, %s54
      %p63 = scmp.eq.s32.totalorder %s32, 3
      %p64 = por %p62, %p63
      %p65 = scmp.ne.s32.totalorder %s54, %s55
      %p66 = scmp.eq.s32.totalorder %s32, 0
      %p67 = por %p65, %p66
      %p68 = scmp.ne.s32.totalorder %s54, %s55
      %p69 = scmp.eq.s32.totalorder %s33, 3
      %p70 = por %p68, %p69
      %p72 = scmp.ne.s32.totalorder %s55, %s71
      %p73 = scmp.eq.s32.totalorder %s33, 0
      %p74 = por %p72, %p73
      %s75 = ssub.s32 %s34, %s46
      %p76 = scmp.eq.s32.totalorder %s75, 0
      %s78 = sadd.s32 %s77, 1
      %s79 = scalar_select %p76, %s77, %s78
      %p82 = pneg %p76
      %p83 = scmp.eq.s32.totalorder %s27, 3
      %p84 = por %p82, %p83
      %p85 = scmp.ne.s32.totalorder %s77, %s80
      %p86 = scmp.eq.s32.totalorder %s27, 0
      %p87 = por %p85, %p86
      %p88 = scmp.ne.s32.totalorder %s77, %s80
      %p89 = scmp.eq.s32.totalorder %s32, 3
      %p90 = por %p88, %p89
      %p91 = scmp.ne.s32.totalorder %s80, %s81
      %p92 = scmp.eq.s32.totalorder %s32, 0
      %p93 = por %p91, %p92
      %p94 = scmp.ne.s32.totalorder %s80, %s81
      %p95 = scmp.eq.s32.totalorder %s33, 3
      %p96 = por %p94, %p95
      %p98 = scmp.ne.s32.totalorder %s81, %s97
      %p99 = scmp.eq.s32.totalorder %s33, 0
      %p100 = por %p98, %p99
      %s102 = sadd.s32 %s101, 1
      %p105 = scmp.eq.s32.totalorder %s27, 3
      %p106 = scmp.ne.s32.totalorder %s101, %s103
      %p107 = scmp.eq.s32.totalorder %s27, 0
      %p108 = por %p106, %p107
      %p109 = scmp.ne.s32.totalorder %s101, %s103
      %p110 = scmp.eq.s32.totalorder %s32, 3
      %p111 = por %p109, %p110
      %p112 = scmp.ne.s32.totalorder %s103, %s104
      %p113 = scmp.eq.s32.totalorder %s32, 0
      %p114 = por %p112, %p113
      %p115 = scmp.ne.s32.totalorder %s103, %s104
      %p116 = scmp.eq.s32.totalorder %s33, 3
      %p117 = por %p115, %p116
      %p119 = scmp.ne.s32.totalorder %s104, %s118
      %p120 = scmp.eq.s32.totalorder %s33, 0
      %p121 = por %p119, %p120
      %s123 = sadd.s32 %s122, 1
      %p126 = scmp.eq.s32.totalorder %s27, 3
      %p127 = scmp.ne.s32.totalorder %s122, %s124
      %p128 = scmp.eq.s32.totalorder %s27, 0
      %p129 = por %p127, %p128
      %p130 = scmp.ne.s32.totalorder %s122, %s124
      %p131 = scmp.eq.s32.totalorder %s32, 3
      %p132 = por %p130, %p131
      %p133 = scmp.ne.s32.totalorder %s124, %s125
      %p134 = scmp.eq.s32.totalorder %s32, 0
      %p135 = por %p133, %p134
      %p136 = scmp.ne.s32.totalorder %s124, %s125
      %p137 = scmp.eq.s32.totalorder %s33, 3
      %p138 = por %p136, %p137
      %p140 = scmp.ne.s32.totalorder %s125, %s139
      %p141 = scmp.eq.s32.totalorder %s33, 0
      %p142 = por %p140, %p141
      %s144 = sadd.s32 %s143, 1
      %p147 = scmp.eq.s32.totalorder %s27, 3
      %p148 = scmp.ne.s32.totalorder %s143, %s145
      %p149 = scmp.eq.s32.totalorder %s27, 0
      %p150 = por %p148, %p149
      %p151 = scmp.ne.s32.totalorder %s143, %s145
      %p152 = scmp.eq.s32.totalorder %s32, 3
      %p153 = por %p151, %p152
      %p154 = scmp.ne.s32.totalorder %s145, %s146
      %p155 = scmp.eq.s32.totalorder %s32, 0
      %p156 = por %p154, %p155
      %p157 = scmp.ne.s32.totalorder %s145, %s146
      %p158 = scmp.eq.s32.totalorder %s33, 3
      %p159 = por %p157, %p158
      %p161 = scmp.ne.s32.totalorder %s146, %s160
      %p162 = scmp.eq.s32.totalorder %s33, 0
      %p163 = por %p161, %p162
      %s165 = sadd.s32 %s164, 1
      %p168 = scmp.eq.s32.totalorder %s27, 3
      %p169 = scmp.ne.s32.totalorder %s164, %s166
      %p170 = scmp.eq.s32.totalorder %s27, 0
      %p171 = por %p169, %p170
      %p172 = scmp.ne.s32.totalorder %s164, %s166
      %p173 = scmp.eq.s32.totalorder %s32, 3
      %p174 = por %p172, %p173
      %p175 = scmp.ne.s32.totalorder %s166, %s167
      %p176 = scmp.eq.s32.totalorder %s32, 0
      %p177 = por %p175, %p176
      %p178 = scmp.ne.s32.totalorder %s166, %s167
      %p179 = scmp.eq.s32.totalorder %s33, 3
      %p180 = por %p178, %p179
      %p182 = scmp.ne.s32.totalorder %s167, %s181
      %p183 = scmp.eq.s32.totalorder %s33, 0
      %p184 = por %p182, %p183
      %s185 = ssub.s32 %s34, %s46
      %s186 = ssub.s32 %s35, %s42
      %s187 = sor.u32 %s185, %s186
      %p188 = scmp.eq.s32.totalorder %s187, 0
      %s190 = sadd.s32 %s189, 1
      %s191 = scalar_select %p188, %s189, %s190
      %p194 = pneg %p188
      %p195 = scmp.eq.s32.totalorder %s27, 3
      %p196 = por %p194, %p195
      %p197 = scmp.ne.s32.totalorder %s189, %s192
      %p198 = scmp.eq.s32.totalorder %s27, 0
      %p199 = por %p197, %p198
      %p200 = scmp.ne.s32.totalorder %s189, %s192
      %p201 = scmp.eq.s32.totalorder %s32, 3
      %p202 = por %p200, %p201
      %p203 = scmp.ne.s32.totalorder %s192, %s193
      %p204 = scmp.eq.s32.totalorder %s32, 0
      %p205 = por %p203, %p204
      %p206 = scmp.ne.s32.totalorder %s192, %s193
      %p207 = scmp.eq.s32.totalorder %s33, 3
      %p208 = por %p206, %p207
      %p210 = scmp.ne.s32.totalorder %s193, %s209
      %p211 = scmp.eq.s32.totalorder %s33, 0
      %p212 = por %p210, %p211
      %s213 = ssub.s32 %s34, %s46
      %s214 = ssub.s32 %s35, %s42
      %s215 = sor.u32 %s213, %s214
      %p216 = scmp.eq.s32.totalorder %s215, 0
      %s218 = sadd.s32 %s217, 1
      %s219 = scalar_select %p216, %s217, %s218
      %p222 = pneg %p216
      %p223 = scmp.eq.s32.totalorder %s27, 3
      %p224 = por %p222, %p223
      %p225 = scmp.ne.s32.totalorder %s217, %s220
      %p226 = scmp.eq.s32.totalorder %s27, 0
      %p227 = por %p225, %p226
      %p228 = scmp.ne.s32.totalorder %s217, %s220
      %p229 = scmp.eq.s32.totalorder %s32, 3
      %p230 = por %p228, %p229
      %p231 = scmp.ne.s32.totalorder %s220, %s221
      %p232 = scmp.eq.s32.totalorder %s32, 0
      %p233 = por %p231, %p232
      %p234 = scmp.ne.s32.totalorder %s220, %s221
      %p235 = scmp.eq.s32.totalorder %s33, 3
      %p236 = por %p234, %p235
      %p238 = scmp.ne.s32.totalorder %s221, %s237
      %p239 = scmp.eq.s32.totalorder %s33, 0
      %p240 = por %p238, %p239
      %p241 = scmp.le.s32.totalorder 1, %s27
      %p242 = scmp.lt.s32.totalorder %s27, 5
      %p243 = pnand %p241, %p242
      %p244 = pneg %p243
      // Predicated region
      $region9: #{tpu_custom_call.1} parent=5 // pred_check
        _
      $region10: #{tpu_custom_call.1} parent=5 // pred_check_branch
        %246 = sbr.rel (%p243) target = $region12
      $region11: #{tpu_custom_call.1} parent=5 // pred_region
        %s247 = ssub.s32 %s27, 1
        // Predicated region
        $region13: #{tpu_custom_call.1} parent=11 // pred_check
          %p248 = pneg %p114
        $region14: #{tpu_custom_call.1} parent=11 // pred_check_branch
          %250 = sbr.rel (%p248) target = $region16
        $region15: #{tpu_custom_call.1} parent=11 // pred_region
          %s252 = ssub.s32 512, 512
          %253 = vsyncadd [#allocation9], %s252
          %s254 = sshll.u32 [#allocation10], 4
          %s255 = int_to_ptr.vmem [resolvable:$true] %s254
          %260 = dma.hbm_to_vmem [thread:$0]  %s2, 512, %s255, [#allocation9], 128, 128, 8
        $region16: #{tpu_custom_call.1} parent=11 // pred_fallthru
          _
        // Predicated region
        $region17: #{tpu_custom_call.1} parent=11 // pred_check
          %p261 = pneg %p135
        $region18: #{tpu_custom_call.1} parent=11 // pred_check_branch
          %263 = sbr.rel (%p261) target = $region20
        $region19: #{tpu_custom_call.1} parent=11 // pred_region
          %s265 = ssub.s32 512, 512
          %266 = vsyncadd [#allocation12], %s265
          %s267 = sshll.u32 [#allocation11], 4
          %s268 = int_to_ptr.vmem [resolvable:$true] %s267
          %273 = dma.hbm_to_vmem [thread:$0]  %s3, 512, %s268, [#allocation12], 128, 128, 8
        $region20: #{tpu_custom_call.1} parent=11 // pred_fallthru
          _
        // Predicated region
        $region21: #{tpu_custom_call.1} parent=11 // pred_check
          %p274 = pneg %p156
        $region22: #{tpu_custom_call.1} parent=11 // pred_check_branch
          %276 = sbr.rel (%p274) target = $region24
        $region23: #{tpu_custom_call.1} parent=11 // pred_region
          %s278 = ssub.s32 512, 512
          %279 = vsyncadd [#allocation12], %s278
          %s280 = sshll.u32 [#allocation13], 4
          %s281 = int_to_ptr.vmem [resolvable:$true] %s280
          %286 = dma.hbm_to_vmem [thread:$0]  %s4, 512, %s281, [#allocation12], 128, 128, 8
        $region24: #{tpu_custom_call.1} parent=11 // pred_fallthru
          _
        // Predicated region
        $region25: #{tpu_custom_call.1} parent=11 // pred_check
          %p287 = pneg %p177
        $region26: #{tpu_custom_call.1} parent=11 // pred_check_branch
          %289 = sbr.rel (%p287) target = $region28
        $region27: #{tpu_custom_call.1} parent=11 // pred_region
          _
        $region28: #{tpu_custom_call.1} parent=11 // pred_fallthru
          _
      $region12: #{tpu_custom_call.1} parent=5 // pred_fallthru
        _
      %p290 = scmp.lt.s32.totalorder %s27, 4
      // Predicated region
      $region29: #{tpu_custom_call.1} parent=5 // pred_check
        %p291 = pneg %p290
      $region30: #{tpu_custom_call.1} parent=5 // pred_check_branch
        %293 = sbr.rel (%p291) target = $region32
      $region31: #{tpu_custom_call.1} parent=5 // pred_region
        // Predicated region
        $region33: #{tpu_custom_call.1} parent=31 // pred_check
          %p294 = pneg %p61
        $region34: #{tpu_custom_call.1} parent=31 // pred_check_branch
          %296 = sbr.rel (%p294) target = $region36
        $region35: #{tpu_custom_call.1} parent=31 // pred_region
          %s297 = sand.u32 %s51, 1
          %s298 = scalar_lea.sflag [#allocation6], %s297
          %s299 = sand.u32 %s51, 1
          %s300 = smul.addr %s299, 8
          %s301 = scalar_lea.vmem [#allocation5], %s300
          %s303 = ssub.s32 128, 128
          %304 = vsyncadd %s298, %s303
          %s305 = smul.addr %s34, 2
          %s306 = sadd.s32 %s35, %s305
          %s307 = smul.addr %s306, 128
          %s308 = scalar_lea.hbm %s0, %s307
          %s310 = sshll.u32 %s301, 4
          %s311 = int_to_ptr.vmem [resolvable:$true] %s310
          %313 = dma.hbm_to_vmem [thread:$0]  %s308, 128, %s311, %s298
        $region36: #{tpu_custom_call.1} parent=31 // pred_fallthru
          _
        // Predicated region
        $region37: #{tpu_custom_call.1} parent=31 // pred_check
          %p314 = pneg %p87
        $region38: #{tpu_custom_call.1} parent=31 // pred_check_branch
          %316 = sbr.rel (%p314) target = $region40
        $region39: #{tpu_custom_call.1} parent=31 // pred_region
          %s317 = sand.u32 %s27, 1
          %s318 = scalar_lea.sflag [#allocation9], %s317
          %s319 = sand.u32 %s77, 1
          %s320 = smul.addr %s319, 16
          %s321 = scalar_lea.vmem [#allocation8], %s320
          %s323 = ssub.s32 256, 256
          %324 = vsyncadd %s318, %s323
          %s325 = smul.addr %s34, 2
          %s326 = smul.addr %s325, 128
          %s327 = scalar_lea.hbm %s1, %s326
          %s328 = sshll.u32 %s321, 4
          %s329 = int_to_ptr.vmem [resolvable:$true] %s328
          %334 = dma.hbm_to_vmem [thread:$0]  %s327, 256, %s329, %s318, 128, 128, 8
        $region40: #{tpu_custom_call.1} parent=31 // pred_fallthru
          _
      $region32: #{tpu_custom_call.1} parent=5 // pred_fallthru
        _
      %p335 = scmp.le.s32.totalorder 1, %s27
      %p336 = scmp.lt.s32.totalorder %s27, 5
      %p337 = pnand %p335, %p336
      %p338 = pneg %p337
      // Predicated region
      $region41: #{tpu_custom_call.1} parent=5 // pred_check
        _
      $region42: #{tpu_custom_call.1} parent=5 // pred_check_branch
        %340 = sbr.rel (%p337) target = $region44
      $region43: #{tpu_custom_call.1} parent=5 // pred_region
        %s341 = ssub.s32 %s27, 1
        %s342 = sand.u32 %s54, 1
        %s343 = scalar_lea.sflag [#allocation6], %s342
        %s344 = sand.u32 %s54, 1
        %s345 = smul.addr %s344, 8
        %s346 = scalar_lea.vmem [#allocation5], %s345
        // Predicated region
        $region45: #{tpu_custom_call.1} parent=43 // pred_check
          %p347 = pneg %p67
        $region46: #{tpu_custom_call.1} parent=43 // pred_check_branch
          %349 = sbr.rel (%p347) target = $region48
        $region47: #{tpu_custom_call.1} parent=43 // pred_region
          %350 = dma.done %s343, 128
        $region48: #{tpu_custom_call.1} parent=43 // pred_fallthru
          _
        %s351 = sand.u32 %s32, 1
        %s352 = scalar_lea.sflag [#allocation9], %s351
        %s353 = sand.u32 %s80, 1
        %s354 = smul.addr %s353, 16
        %s355 = scalar_lea.vmem [#allocation8], %s354
        // Predicated region
        $region49: #{tpu_custom_call.1} parent=43 // pred_check
          %p356 = pneg %p93
        $region50: #{tpu_custom_call.1} parent=43 // pred_check_branch
          %358 = sbr.rel (%p356) target = $region52
        $region51: #{tpu_custom_call.1} parent=43 // pred_region
          %359 = dma.done %s352, 256
        $region52: #{tpu_custom_call.1} parent=43 // pred_fallthru
          _
        // Predicated region
        $region53: #{tpu_custom_call.1} parent=43 // pred_check
          %p360 = pneg %p114
        $region54: #{tpu_custom_call.1} parent=43 // pred_check_branch
          %362 = sbr.rel (%p360) target = $region56
        $region55: #{tpu_custom_call.1} parent=43 // pred_region
          %363 = dma.done [#allocation9], 512
        $region56: #{tpu_custom_call.1} parent=43 // pred_fallthru
          _
        // Predicated region
        $region57: #{tpu_custom_call.1} parent=43 // pred_check
          %p364 = pneg %p135
        $region58: #{tpu_custom_call.1} parent=43 // pred_check_branch
          %366 = sbr.rel (%p364) target = $region60
        $region59: #{tpu_custom_call.1} parent=43 // pred_region
          %367 = dma.done [#allocation12], 512
        $region60: #{tpu_custom_call.1} parent=43 // pred_fallthru
          _
        // Predicated region
        $region61: #{tpu_custom_call.1} parent=43 // pred_check
          %p368 = pneg %p156
        $region62: #{tpu_custom_call.1} parent=43 // pred_check_branch
          %370 = sbr.rel (%p368) target = $region64
        $region63: #{tpu_custom_call.1} parent=43 // pred_region
          %371 = dma.done [#allocation12], 512
        $region64: #{tpu_custom_call.1} parent=43 // pred_fallthru
          _
        %s372 = sand.u32 %s54, 1
        %s373 = scalar_lea.sflag [#allocation6], %s372
        %s374 = sand.u32 %s54, 1
        %s375 = smul.addr %s374, 8
        %s376 = scalar_lea.vmem [#allocation5], %s375
        %p377 = pneg %p67
        %p378 = pneg %p64
        %s379 = sand.u32 %s32, 1
        %s380 = scalar_lea.sflag [#allocation9], %s379
        %s381 = sand.u32 %s80, 1
        %s382 = smul.addr %s381, 16
        %s383 = scalar_lea.vmem [#allocation8], %s382
        %p384 = pneg %p93
        %p385 = pneg %p90
        %p386 = pneg %p114
        %p387 = pneg %p111
        %p388 = pneg %p135
        %p389 = pneg %p132
        %p390 = pneg %p156
        %p391 = pneg %p153
        %p392 = pneg %p177
        %p393 = pneg %p174
        %p394 = pneg %p205
        %p395 = pneg %p202
        %s396 = sand.u32 %s192, 1
        %s397 = scalar_lea.sflag [#allocation7], %s396
        %s398 = sand.u32 %s192, 1
        %s399 = smul.addr %s398, 8
        %s400 = scalar_lea.vmem [#allocation14], %s399
        %p401 = pneg %p233
        %p402 = pneg %p230
        %s403 = sand.u32 %s220, 1
        %s404 = scalar_lea.sflag [#allocation16], %s403
        %s405 = sand.u32 %s220, 1
        %s406 = smul.addr %s405, 8
        %s407 = scalar_lea.vmem [#allocation15], %s406
        %p408 = scmp.eq.s32.totalorder %s37, 0
        // Predicated region
        $region65: #{tpu_custom_call.1} parent=43 // pred_check
          %p409 = pneg %p408
        $region66: #{tpu_custom_call.1} parent=43 // pred_check_branch
          %411 = sbr.rel (%p409) target = $region68
        $region67: #{tpu_custom_call.1} parent=43 // pred_region
          %v412 = vld [vmem:[%s355] sm:$0xff]
          %v413 = vld [vmem:[%s355 + $0x8] sm:$0xff]
          %v414 = vld [vmem:[#allocation11] sm:$0xff]
          %v415 = vld [vmem:[#allocation11 + $0x8] sm:$0xff]
          %v416 = vld [vmem:[#allocation11 + $0x10] sm:$0xff]
          %v417 = vld [vmem:[#allocation11 + $0x18] sm:$0xff]
          %vm418 = vcmask 261120
          %v420 = vsel %vm418, %v412, 0
          %v423 = vsel %vm418, %v413, 0
          %425 = vmatprep.subr.mxu0 0.0
          %426 = vmatpush1.msra.mxu0 0.0
          %427 = vmatprep.subr.mxu0 0.0
          %428 = vmatpush1.msra.mxu0 0.0
          %429 = vmatprep.subr.mxu0 0.0
          %430 = vmatpush1.msra.mxu0 0.0
          %431 = vmatprep.subr.mxu0 0.0
          %432 = vmatpush1.msra.mxu0 0.0
          %433 = vmatprep.subr.mxu0 0.0
          %434 = vmatpush1.msra.mxu0 0.0
          %435 = vmatprep.subr.mxu0 0.0
          %436 = vmatpush1.msra.mxu0 0.0
          %437 = vmatprep.subr.mxu0 0.0
          %438 = vmatpush1.msra.mxu0 0.0
          %439 = vmatprep.subr.mxu0 0.0
          %440 = vmatpush1.msra.mxu0 0.0
          %441 = vmatprep.subr.mxu0 0.0
          %442 = vmatpush1.msra.mxu0 0.0
          %443 = vmatprep.subr.mxu0 0.0
          %444 = vmatpush1.msra.mxu0 0.0
          %445 = vmatprep.subr.mxu0 0.0
          %446 = vmatpush1.msra.mxu0 0.0
          %447 = vmatprep.subr.mxu0 0.0
          %448 = vmatpush1.msra.mxu0 0.0
          %449 = vmatprep.subr.mxu0 0.0
          %450 = vmatpush1.msra.mxu0 %v417
          %451 = vmatprep.subr.mxu0 0.0
          %452 = vmatpush1.msra.mxu0 %v416
          %453 = vmatprep.subr.mxu0 0.0
          %454 = vmatpush1.msra.mxu0 %v415
          %455 = vmatprep.subr.mxu0 0.0
          %456 = vmatpush1.msra.mxu0 %v414
          %457 = vmatprep.subr.mxu0 0.0
          %458 = vmatpush2.msra.mxu0 0.0
          %459 = vmatprep.subr.mxu0 0.0
          %460 = vmatpush2.msra.mxu0 0.0
          %461 = vmatprep.subr.mxu0 0.0
          %462 = vmatpush2.msra.mxu0 0.0
          %463 = vmatprep.subr.mxu0 0.0
          %464 = vmatpush2.msra.mxu0 0.0
          %465 = vmatprep.subr.mxu0 0.0
          %466 = vmatpush2.msra.mxu0 0.0
          %467 = vmatprep.subr.mxu0 0.0
          %468 = vmatpush2.msra.mxu0 0.0
          %469 = vmatprep.subr.mxu0 0.0
          %470 = vmatpush2.msra.mxu0 0.0
          %471 = vmatprep.subr.mxu0 0.0
          %472 = vmatpush2.msra.mxu0 0.0
          %473 = vmatprep.subr.mxu0 0.0
          %474 = vmatpush2.msra.mxu0 0.0
          %475 = vmatprep.subr.mxu0 0.0
          %476 = vmatpush2.msra.mxu0 0.0
          %477 = vmatprep.subr.mxu0 0.0
          %478 = vmatpush2.msra.mxu0 0.0
          %479 = vmatprep.subr.mxu0 0.0
          %480 = vmatpush2.msra.mxu0 0.0
          %481 = vmatprep.subr.mxu0 0.0
          %482 = vmatpush2.msra.mxu0 0.0
          %483 = vmatprep.subr.mxu0 0.0
          %484 = vmatpush2.msra.mxu0 0.0
          %485 = vmatprep.subr.mxu0 0.0
          %486 = vmatpush2.msra.mxu0 0.0
          %487 = vmatprep.subr.mxu0 0.0
          %488 = vmatpush2.msra.mxu0 0.0
          %489 = vmatprep.mubr.f32.mxu0 0.0
          %490 = vmatmul.mubr.f32.gmra.mxu0 %v420
          %v491 = vpop.f32.mrf.mxu0
          %v492 = vadd.f32 0.0, %v491
          %v493 = vpop.f32.mrf.mxu0
          %494 = vmatprep.mubr.f32.mxu0 0.0
          %495 = vmatmul.mubr.f32.gmra.mxu0 %v423
          %v496 = vpop.f32.mrf.mxu0
          %v497 = vadd.f32 0.0, %v496
          %v498 = vpop.f32.mrf.mxu0
          %499 = vdwg.mxu0
          %vm500 = vcmask 64512
          %501 = vst.msk [vmem:[#allocation2] sm:$0xff] %vm500, %v492
          %502 = vst.msk [vmem:[#allocation2 + $0x8] sm:$0xff] %vm500, %v497
          %505 = vrot.lane.b32.xlu0 %v492, 96
          %v506 = vpop.permute.xlu0 %505
          %507 = vrot.lane.b32.xlu0 %v497, 96
          %v508 = vpop.permute.xlu0 %507
          %511 = vst.msk [vmem:[#allocation3] sm:$0xff] %vm500, %v506
          %512 = vst.msk [vmem:[#allocation3 + $0x8] sm:$0xff] %vm500, %v508
          %513 = vrot.lane.b32.xlu0 %v492, 120
          %v514 = vpop.permute.xlu0 %513
          %515 = vrot.lane.b32.xlu0 %v497, 120
          %v516 = vpop.permute.xlu0 %515
          %s519 = scalar_lea.vmem [#allocation2], 16
          %520 = vst.msk [vmem:[%s519] sm:$0xff] %vm500, %v514
          %521 = vst.msk [vmem:[%s519 + $0x8] sm:$0xff] %vm500, %v516
          %522 = vrot.lane.b32.xlu0 %v492, 88
          %v523 = vpop.permute.xlu0 %522
          %524 = vrot.lane.b32.xlu0 %v497, 88
          %v525 = vpop.permute.xlu0 %524
          %s528 = scalar_lea.vmem [#allocation3], 16
          %529 = vst.msk [vmem:[%s528] sm:$0xff] %vm500, %v523
          %530 = vst.msk [vmem:[%s528 + $0x8] sm:$0xff] %vm500, %v525
          %531 = vrot.lane.b32.xlu0 %v492, 112
          %v532 = vpop.permute.xlu0 %531
          %533 = vrot.lane.b32.xlu0 %v497, 112
          %v534 = vpop.permute.xlu0 %533
          %s537 = scalar_lea.vmem [#allocation2], 32
          %538 = vst.msk [vmem:[%s537] sm:$0xff] %vm500, %v532
          %539 = vst.msk [vmem:[%s537 + $0x8] sm:$0xff] %vm500, %v534
          %540 = vrot.lane.b32.xlu0 %v492, 80
          %v541 = vpop.permute.xlu0 %540
          %542 = vrot.lane.b32.xlu0 %v497, 80
          %v543 = vpop.permute.xlu0 %542
          %s546 = scalar_lea.vmem [#allocation3], 32
          %547 = vst.msk [vmem:[%s546] sm:$0xff] %vm500, %v541
          %548 = vst.msk [vmem:[%s546 + $0x8] sm:$0xff] %vm500, %v543
          %549 = vrot.lane.b32.xlu0 %v492, 104
          %v550 = vpop.permute.xlu0 %549
          %551 = vrot.lane.b32.xlu0 %v497, 104
          %v552 = vpop.permute.xlu0 %551
          %s555 = scalar_lea.vmem [#allocation2], 48
          %556 = vst.msk [vmem:[%s555] sm:$0xff] %vm500, %v550
          %557 = vst.msk [vmem:[%s555 + $0x8] sm:$0xff] %vm500, %v552
          %558 = vrot.lane.b32.xlu0 %v492, 72
          %v559 = vpop.permute.xlu0 %558
          %560 = vrot.lane.b32.xlu0 %v497, 72
          %v561 = vpop.permute.xlu0 %560
          %s564 = scalar_lea.vmem [#allocation3], 48
          %565 = vst.msk [vmem:[%s564] sm:$0xff] %vm500, %v559
          %566 = vst.msk [vmem:[%s564 + $0x8] sm:$0xff] %vm500, %v561
        $region68: #{tpu_custom_call.1} parent=43 // pred_fallthru
          _
        %v567 = vld [vmem:[%s346] sm:$0xff]
        %v568 = vld [vmem:[#allocation10] sm:$0xff]
        %v569 = vld [vmem:[#allocation10 + $0x8] sm:$0xff]
        %v570 = vld [vmem:[#allocation10 + $0x10] sm:$0xff]
        %v571 = vld [vmem:[#allocation10 + $0x18] sm:$0xff]
        %vm572 = vcmask 261120
        %v574 = vsel %vm572, %v567, 0
        %576 = vmatprep.subr.mxu0 0.0
        %577 = vmatpush1.msra.mxu0 0.0
        %578 = vmatprep.subr.mxu0 0.0
        %579 = vmatpush1.msra.mxu0 0.0
        %580 = vmatprep.subr.mxu0 0.0
        %581 = vmatpush1.msra.mxu0 0.0
        %582 = vmatprep.subr.mxu0 0.0
        %583 = vmatpush1.msra.mxu0 0.0
        %584 = vmatprep.subr.mxu0 0.0
        %585 = vmatpush1.msra.mxu0 0.0
        %586 = vmatprep.subr.mxu0 0.0
        %587 = vmatpush1.msra.mxu0 0.0
        %588 = vmatprep.subr.mxu0 0.0
        %589 = vmatpush1.msra.mxu0 0.0
        %590 = vmatprep.subr.mxu0 0.0
        %591 = vmatpush1.msra.mxu0 0.0
        %592 = vmatprep.subr.mxu0 0.0
        %593 = vmatpush1.msra.mxu0 0.0
        %594 = vmatprep.subr.mxu0 0.0
        %595 = vmatpush1.msra.mxu0 0.0
        %596 = vmatprep.subr.mxu0 0.0
        %597 = vmatpush1.msra.mxu0 0.0
        %598 = vmatprep.subr.mxu0 0.0
        %599 = vmatpush1.msra.mxu0 0.0
        %600 = vmatprep.subr.mxu0 0.0
        %601 = vmatpush1.msra.mxu0 %v571
        %602 = vmatprep.subr.mxu0 0.0
        %603 = vmatpush1.msra.mxu0 %v570
        %604 = vmatprep.subr.mxu0 0.0
        %605 = vmatpush1.msra.mxu0 %v569
        %606 = vmatprep.subr.mxu0 0.0
        %607 = vmatpush1.msra.mxu0 %v568
        %608 = vmatprep.subr.mxu0 0.0
        %609 = vmatpush2.msra.mxu0 0.0
        %610 = vmatprep.subr.mxu0 0.0
        %611 = vmatpush2.msra.mxu0 0.0
        %612 = vmatprep.subr.mxu0 0.0
        %613 = vmatpush2.msra.mxu0 0.0
        %614 = vmatprep.subr.mxu0 0.0
        %615 = vmatpush2.msra.mxu0 0.0
        %616 = vmatprep.subr.mxu0 0.0
        %617 = vmatpush2.msra.mxu0 0.0
        %618 = vmatprep.subr.mxu0 0.0
        %619 = vmatpush2.msra.mxu0 0.0
        %620 = vmatprep.subr.mxu0 0.0
        %621 = vmatpush2.msra.mxu0 0.0
        %622 = vmatprep.subr.mxu0 0.0
        %623 = vmatpush2.msra.mxu0 0.0
        %624 = vmatprep.subr.mxu0 0.0
        %625 = vmatpush2.msra.mxu0 0.0
        %626 = vmatprep.subr.mxu0 0.0
        %627 = vmatpush2.msra.mxu0 0.0
        %628 = vmatprep.subr.mxu0 0.0
        %629 = vmatpush2.msra.mxu0 0.0
        %630 = vmatprep.subr.mxu0 0.0
        %631 = vmatpush2.msra.mxu0 0.0
        %632 = vmatprep.subr.mxu0 0.0
        %633 = vmatpush2.msra.mxu0 0.0
        %634 = vmatprep.subr.mxu0 0.0
        %635 = vmatpush2.msra.mxu0 0.0
        %636 = vmatprep.subr.mxu0 0.0
        %637 = vmatpush2.msra.mxu0 0.0
        %638 = vmatprep.subr.mxu0 0.0
        %639 = vmatpush2.msra.mxu0 0.0
        %640 = vmatprep.mubr.f32.mxu0 0.0
        %641 = vmatmul.mubr.f32.gmra.mxu0 %v574
        %v642 = vpop.f32.mrf.mxu0
        %v643 = vadd.f32 0.0, %v642
        %v644 = vpop.f32.mrf.mxu0
        %645 = vdwg.mxu0
        %v646 = vld [vmem:[#allocation2] sm:$0xff]
        %v647 = vld [vmem:[#allocation2 + $0x8] sm:$0xff]
        %v648 = vld [vmem:[#allocation3] sm:$0xff]
        %v649 = vld [vmem:[#allocation3 + $0x8] sm:$0xff]
        %vm650 = vcmask 64512
        %v652 = vsel %vm650, %v643, 0
        %v655 = vsel %vm650, %v646, 0
        %v658 = vsel %vm650, %v647, 0
        %660 = vmatprep.subr.mxu0 0.0
        %661 = vmatpush1.xpose.msra.mxu0 0.0
        %662 = vmatprep.subr.mxu0 0.0
        %663 = vmatpush1.xpose.msra.mxu0 0.0
        %664 = vmatprep.subr.mxu0 0.0
        %665 = vmatpush1.xpose.msra.mxu0 0.0
        %666 = vmatprep.subr.mxu0 0.0
        %667 = vmatpush1.xpose.msra.mxu0 0.0
        %668 = vmatprep.subr.mxu0 0.0
        %669 = vmatpush1.xpose.msra.mxu0 0.0
        %670 = vmatprep.subr.mxu0 0.0
        %671 = vmatpush1.xpose.msra.mxu0 0.0
        %672 = vmatprep.subr.mxu0 0.0
        %673 = vmatpush1.xpose.msra.mxu0 0.0
        %674 = vmatprep.subr.mxu0 0.0
        %675 = vmatpush1.xpose.msra.mxu0 0.0
        %676 = vmatprep.subr.mxu0 0.0
        %677 = vmatpush1.xpose.msra.mxu0 0.0
        %678 = vmatprep.subr.mxu0 0.0
        %679 = vmatpush1.xpose.msra.mxu0 0.0
        %680 = vmatprep.subr.mxu0 0.0
        %681 = vmatpush1.xpose.msra.mxu0 0.0
        %682 = vmatprep.subr.mxu0 0.0
        %683 = vmatpush1.xpose.msra.mxu0 0.0
        %684 = vmatprep.subr.mxu0 0.0
        %685 = vmatpush1.xpose.msra.mxu0 0.0
        %686 = vmatprep.subr.mxu0 0.0
        %687 = vmatpush1.xpose.msra.mxu0 0.0
        %688 = vmatprep.subr.mxu0 0.0
        %689 = vmatpush1.xpose.msra.mxu0 %v658
        %690 = vmatprep.subr.mxu0 0.0
        %691 = vmatpush1.xpose.msra.mxu0 %v655
        %692 = vmatprep.subr.mxu0 0.0
        %693 = vmatpush2.xpose.msra.mxu0 0.0
        %694 = vmatprep.subr.mxu0 0.0
        %695 = vmatpush2.xpose.msra.mxu0 0.0
        %696 = vmatprep.subr.mxu0 0.0
        %697 = vmatpush2.xpose.msra.mxu0 0.0
        %698 = vmatprep.subr.mxu0 0.0
        %699 = vmatpush2.xpose.msra.mxu0 0.0
        %700 = vmatprep.subr.mxu0 0.0
        %701 = vmatpush2.xpose.msra.mxu0 0.0
        %702 = vmatprep.subr.mxu0 0.0
        %703 = vmatpush2.xpose.msra.mxu0 0.0
        %704 = vmatprep.subr.mxu0 0.0
        %705 = vmatpush2.xpose.msra.mxu0 0.0
        %706 = vmatprep.subr.mxu0 0.0
        %707 = vmatpush2.xpose.msra.mxu0 0.0
        %708 = vmatprep.subr.mxu0 0.0
        %709 = vmatpush2.xpose.msra.mxu0 0.0
        %710 = vmatprep.subr.mxu0 0.0
        %711 = vmatpush2.xpose.msra.mxu0 0.0
        %712 = vmatprep.subr.mxu0 0.0
        %713 = vmatpush2.xpose.msra.mxu0 0.0
        %714 = vmatprep.subr.mxu0 0.0
        %715 = vmatpush2.xpose.msra.mxu0 0.0
        %716 = vmatprep.subr.mxu0 0.0
        %717 = vmatpush2.xpose.msra.mxu0 0.0
        %718 = vmatprep.subr.mxu0 0.0
        %719 = vmatpush2.xpose.msra.mxu0 0.0
        %720 = vmatprep.subr.mxu0 0.0
        %721 = vmatpush2.xpose.msra.mxu0 0.0
        %722 = vmatprep.subr.mxu0 0.0
        %723 = vmatpush2.xpose.msra.mxu0 0.0
        %724 = vmatprep.mubr.f32.mxu0 0.0
        %725 = vmatmul.mubr.f32.gmra.mxu0 %v652
        %v726 = vpop.f32.mrf.mxu0
        %v727 = vadd.f32 0.0, %v726
        %v728 = vpop.f32.mrf.mxu0
        %729 = vdwg.mxu0
        %vm730 = vcmask 130048
        %v731 = vsel %vm730, %v727, -inf
        %732 = vmax.xlane.f32.xlu0 %v731
        %v733 = vpop.xlane.xlu0 %732
        %v734 = vsub.f32 %v727, %v733
        %v735 = vmul.f32 %v734, 1.442695
        %v736 = vpow.pop %v735
        %v737 = vsel %vm730, %v736, 0.0
        %738 = vadd.xlane.f32.xlu0 %v737
        %v739 = vpop.xlane.xlu0 %738
        %v740 = vrcp.pop %v739
        %v741 = vmul.f32 %v736, %v740
        %v743 = vsel %vm730, %v741, 0
        %745 = vmatprep.subr.mxu0 0.0
        %746 = vmatpush1.msra.mxu0 0.0
        %747 = vmatprep.subr.mxu0 0.0
        %748 = vmatpush1.msra.mxu0 0.0
        %749 = vmatprep.subr.mxu0 0.0
        %750 = vmatpush1.msra.mxu0 0.0
        %751 = vmatprep.subr.mxu0 0.0
        %752 = vmatpush1.msra.mxu0 0.0
        %753 = vmatprep.subr.mxu0 0.0
        %754 = vmatpush1.msra.mxu0 0.0
        %755 = vmatprep.subr.mxu0 0.0
        %756 = vmatpush1.msra.mxu0 0.0
        %757 = vmatprep.subr.mxu0 0.0
        %758 = vmatpush1.msra.mxu0 0.0
        %759 = vmatprep.subr.mxu0 0.0
        %760 = vmatpush1.msra.mxu0 0.0
        %761 = vmatprep.subr.mxu0 0.0
        %762 = vmatpush1.msra.mxu0 0.0
        %763 = vmatprep.subr.mxu0 0.0
        %764 = vmatpush1.msra.mxu0 0.0
        %765 = vmatprep.subr.mxu0 0.0
        %766 = vmatpush1.msra.mxu0 0.0
        %767 = vmatprep.subr.mxu0 0.0
        %768 = vmatpush1.msra.mxu0 0.0
        %769 = vmatprep.subr.mxu0 0.0
        %770 = vmatpush1.msra.mxu0 0.0
        %771 = vmatprep.subr.mxu0 0.0
        %772 = vmatpush1.msra.mxu0 0.0
        %773 = vmatprep.subr.mxu0 0.0
        %774 = vmatpush1.msra.mxu0 %v649
        %775 = vmatprep.subr.mxu0 0.0
        %776 = vmatpush1.msra.mxu0 %v648
        %777 = vmatprep.subr.mxu0 0.0
        %778 = vmatpush2.msra.mxu0 0.0
        %779 = vmatprep.subr.mxu0 0.0
        %780 = vmatpush2.msra.mxu0 0.0
        %781 = vmatprep.subr.mxu0 0.0
        %782 = vmatpush2.msra.mxu0 0.0
        %783 = vmatprep.subr.mxu0 0.0
        %784 = vmatpush2.msra.mxu0 0.0
        %785 = vmatprep.subr.mxu0 0.0
        %786 = vmatpush2.msra.mxu0 0.0
        %787 = vmatprep.subr.mxu0 0.0
        %788 = vmatpush2.msra.mxu0 0.0
        %789 = vmatprep.subr.mxu0 0.0
        %790 = vmatpush2.msra.mxu0 0.0
        %791 = vmatprep.subr.mxu0 0.0
        %792 = vmatpush2.msra.mxu0 0.0
        %793 = vmatprep.subr.mxu0 0.0
        %794 = vmatpush2.msra.mxu0 0.0
        %795 = vmatprep.subr.mxu0 0.0
        %796 = vmatpush2.msra.mxu0 0.0
        %797 = vmatprep.subr.mxu0 0.0
        %798 = vmatpush2.msra.mxu0 0.0
        %799 = vmatprep.subr.mxu0 0.0
        %800 = vmatpush2.msra.mxu0 0.0
        %801 = vmatprep.subr.mxu0 0.0
        %802 = vmatpush2.msra.mxu0 0.0
        %803 = vmatprep.subr.mxu0 0.0
        %804 = vmatpush2.msra.mxu0 0.0
        %805 = vmatprep.subr.mxu0 0.0
        %806 = vmatpush2.msra.mxu0 0.0
        %807 = vmatprep.subr.mxu0 0.0
        %808 = vmatpush2.msra.mxu0 0.0
        %809 = vmatprep.mubr.f32.mxu0 0.0
        %810 = vmatmul.mubr.f32.gmra.mxu0 %v743
        %v811 = vpop.f32.mrf.mxu0
        %v812 = vadd.f32 0.0, %v811
        %v813 = vpop.f32.mrf.mxu0
        %814 = vdwg.mxu0
        %815 = vst.msk [vmem:[#allocation4] sm:$0xff] %vm650, %v812
        %s816 = scalar_lea.vmem [#allocation2], 16
        %v817 = vld [vmem:[%s816] sm:$0xff]
        %v818 = vld [vmem:[%s816 + $0x8] sm:$0xff]
        %s819 = scalar_lea.vmem [#allocation3], 16
        %v820 = vld [vmem:[%s819] sm:$0xff]
        %v821 = vld [vmem:[%s819 + $0x8] sm:$0xff]
        %822 = vrot.lane.b32.xlu0 %v643, 120
        %v823 = vpop.permute.xlu0 %822
        %v824 = vsel %vm650, %v823, 0
        %v827 = vsel %vm650, %v817, 0
        %v830 = vsel %vm650, %v818, 0
        %832 = vmatprep.subr.mxu0 0.0
        %833 = vmatpush1.xpose.msra.mxu0 0.0
        %834 = vmatprep.subr.mxu0 0.0
        %835 = vmatpush1.xpose.msra.mxu0 0.0
        %836 = vmatprep.subr.mxu0 0.0
        %837 = vmatpush1.xpose.msra.mxu0 0.0
        %838 = vmatprep.subr.mxu0 0.0
        %839 = vmatpush1.xpose.msra.mxu0 0.0
        %840 = vmatprep.subr.mxu0 0.0
        %841 = vmatpush1.xpose.msra.mxu0 0.0
        %842 = vmatprep.subr.mxu0 0.0
        %843 = vmatpush1.xpose.msra.mxu0 0.0
        %844 = vmatprep.subr.mxu0 0.0
        %845 = vmatpush1.xpose.msra.mxu0 0.0
        %846 = vmatprep.subr.mxu0 0.0
        %847 = vmatpush1.xpose.msra.mxu0 0.0
        %848 = vmatprep.subr.mxu0 0.0
        %849 = vmatpush1.xpose.msra.mxu0 0.0
        %850 = vmatprep.subr.mxu0 0.0
        %851 = vmatpush1.xpose.msra.mxu0 0.0
        %852 = vmatprep.subr.mxu0 0.0
        %853 = vmatpush1.xpose.msra.mxu0 0.0
        %854 = vmatprep.subr.mxu0 0.0
        %855 = vmatpush1.xpose.msra.mxu0 0.0
        %856 = vmatprep.subr.mxu0 0.0
        %857 = vmatpush1.xpose.msra.mxu0 0.0
        %858 = vmatprep.subr.mxu0 0.0
        %859 = vmatpush1.xpose.msra.mxu0 0.0
        %860 = vmatprep.subr.mxu0 0.0
        %861 = vmatpush1.xpose.msra.mxu0 %v830
        %862 = vmatprep.subr.mxu0 0.0
        %863 = vmatpush1.xpose.msra.mxu0 %v827
        %864 = vmatprep.subr.mxu0 0.0
        %865 = vmatpush2.xpose.msra.mxu0 0.0
        %866 = vmatprep.subr.mxu0 0.0
        %867 = vmatpush2.xpose.msra.mxu0 0.0
        %868 = vmatprep.subr.mxu0 0.0
        %869 = vmatpush2.xpose.msra.mxu0 0.0
        %870 = vmatprep.subr.mxu0 0.0
        %871 = vmatpush2.xpose.msra.mxu0 0.0
        %872 = vmatprep.subr.mxu0 0.0
        %873 = vmatpush2.xpose.msra.mxu0 0.0
        %874 = vmatprep.subr.mxu0 0.0
        %875 = vmatpush2.xpose.msra.mxu0 0.0
        %876 = vmatprep.subr.mxu0 0.0
        %877 = vmatpush2.xpose.msra.mxu0 0.0
        %878 = vmatprep.subr.mxu0 0.0
        %879 = vmatpush2.xpose.msra.mxu0 0.0
        %880 = vmatprep.subr.mxu0 0.0
        %881 = vmatpush2.xpose.msra.mxu0 0.0
        %882 = vmatprep.subr.mxu0 0.0
        %883 = vmatpush2.xpose.msra.mxu0 0.0
        %884 = vmatprep.subr.mxu0 0.0
        %885 = vmatpush2.xpose.msra.mxu0 0.0
        %886 = vmatprep.subr.mxu0 0.0
        %887 = vmatpush2.xpose.msra.mxu0 0.0
        %888 = vmatprep.subr.mxu0 0.0
        %889 = vmatpush2.xpose.msra.mxu0 0.0
        %890 = vmatprep.subr.mxu0 0.0
        %891 = vmatpush2.xpose.msra.mxu0 0.0
        %892 = vmatprep.subr.mxu0 0.0
        %893 = vmatpush2.xpose.msra.mxu0 0.0
        %894 = vmatprep.subr.mxu0 0.0
        %895 = vmatpush2.xpose.msra.mxu0 0.0
        %896 = vmatprep.mubr.f32.mxu0 0.0
        %897 = vmatmul.mubr.f32.gmra.mxu0 %v824
        %v898 = vpop.f32.mrf.mxu0
        %v899 = vadd.f32 0.0, %v898
        %v900 = vpop.f32.mrf.mxu0
        %901 = vdwg.mxu0
        %v902 = vsel %vm730, %v899, -inf
        %903 = vmax.xlane.f32.xlu0 %v902
        %v904 = vpop.xlane.xlu0 %903
        %v905 = vsub.f32 %v899, %v904
        %v906 = vmul.f32 %v905, 1.442695
        %v907 = vpow.pop %v906
        %v908 = vsel %vm730, %v907, 0.0
        %909 = vadd.xlane.f32.xlu0 %v908
        %v910 = vpop.xlane.xlu0 %909
        %v911 = vrcp.pop %v910
        %v912 = vmul.f32 %v907, %v911
        %v914 = vsel %vm730, %v912, 0
        %916 = vmatprep.subr.mxu0 0.0
        %917 = vmatpush1.msra.mxu0 0.0
        %918 = vmatprep.subr.mxu0 0.0
        %919 = vmatpush1.msra.mxu0 0.0
        %920 = vmatprep.subr.mxu0 0.0
        %921 = vmatpush1.msra.mxu0 0.0
        %922 = vmatprep.subr.mxu0 0.0
        %923 = vmatpush1.msra.mxu0 0.0
        %924 = vmatprep.subr.mxu0 0.0
        %925 = vmatpush1.msra.mxu0 0.0
        %926 = vmatprep.subr.mxu0 0.0
        %927 = vmatpush1.msra.mxu0 0.0
        %928 = vmatprep.subr.mxu0 0.0
        %929 = vmatpush1.msra.mxu0 0.0
        %930 = vmatprep.subr.mxu0 0.0
        %931 = vmatpush1.msra.mxu0 0.0
        %932 = vmatprep.subr.mxu0 0.0
        %933 = vmatpush1.msra.mxu0 0.0
        %934 = vmatprep.subr.mxu0 0.0
        %935 = vmatpush1.msra.mxu0 0.0
        %936 = vmatprep.subr.mxu0 0.0
        %937 = vmatpush1.msra.mxu0 0.0
        %938 = vmatprep.subr.mxu0 0.0
        %939 = vmatpush1.msra.mxu0 0.0
        %940 = vmatprep.subr.mxu0 0.0
        %941 = vmatpush1.msra.mxu0 0.0
        %942 = vmatprep.subr.mxu0 0.0
        %943 = vmatpush1.msra.mxu0 0.0
        %944 = vmatprep.subr.mxu0 0.0
        %945 = vmatpush1.msra.mxu0 %v821
        %946 = vmatprep.subr.mxu0 0.0
        %947 = vmatpush1.msra.mxu0 %v820
        %948 = vmatprep.subr.mxu0 0.0
        %949 = vmatpush2.msra.mxu0 0.0
        %950 = vmatprep.subr.mxu0 0.0
        %951 = vmatpush2.msra.mxu0 0.0
        %952 = vmatprep.subr.mxu0 0.0
        %953 = vmatpush2.msra.mxu0 0.0
        %954 = vmatprep.subr.mxu0 0.0
        %955 = vmatpush2.msra.mxu0 0.0
        %956 = vmatprep.subr.mxu0 0.0
        %957 = vmatpush2.msra.mxu0 0.0
        %958 = vmatprep.subr.mxu0 0.0
        %959 = vmatpush2.msra.mxu0 0.0
        %960 = vmatprep.subr.mxu0 0.0
        %961 = vmatpush2.msra.mxu0 0.0
        %962 = vmatprep.subr.mxu0 0.0
        %963 = vmatpush2.msra.mxu0 0.0
        %964 = vmatprep.subr.mxu0 0.0
        %965 = vmatpush2.msra.mxu0 0.0
        %966 = vmatprep.subr.mxu0 0.0
        %967 = vmatpush2.msra.mxu0 0.0
        %968 = vmatprep.subr.mxu0 0.0
        %969 = vmatpush2.msra.mxu0 0.0
        %970 = vmatprep.subr.mxu0 0.0
        %971 = vmatpush2.msra.mxu0 0.0
        %972 = vmatprep.subr.mxu0 0.0
        %973 = vmatpush2.msra.mxu0 0.0
        %974 = vmatprep.subr.mxu0 0.0
        %975 = vmatpush2.msra.mxu0 0.0
        %976 = vmatprep.subr.mxu0 0.0
        %977 = vmatpush2.msra.mxu0 0.0
        %978 = vmatprep.subr.mxu0 0.0
        %979 = vmatpush2.msra.mxu0 0.0
        %980 = vmatprep.mubr.f32.mxu0 0.0
        %981 = vmatmul.mubr.f32.gmra.mxu0 %v914
        %v982 = vpop.f32.mrf.mxu0
        %v983 = vadd.f32 0.0, %v982
        %v984 = vpop.f32.mrf.mxu0
        %985 = vdwg.mxu0
        %987 = vrot.lane.b32.xlu0 %v983, 8
        %v988 = vpop.permute.xlu0 %987
        %vm990 = vcmask 130112
        %991 = vst.msk [vmem:[#allocation4] sm:$0xff] %vm990, %v988
        %s992 = scalar_lea.vmem [#allocation2], 32
        %v993 = vld [vmem:[%s992] sm:$0xff]
        %v994 = vld [vmem:[%s992 + $0x8] sm:$0xff]
        %s995 = scalar_lea.vmem [#allocation3], 32
        %v996 = vld [vmem:[%s995] sm:$0xff]
        %v997 = vld [vmem:[%s995 + $0x8] sm:$0xff]
        %998 = vrot.lane.b32.xlu0 %v643, 112
        %v999 = vpop.permute.xlu0 %998
        %v1000 = vsel %vm650, %v999, 0
        %v1003 = vsel %vm650, %v993, 0
        %v1006 = vsel %vm650, %v994, 0
        %1008 = vmatprep.subr.mxu0 0.0
        %1009 = vmatpush1.xpose.msra.mxu0 0.0
        %1010 = vmatprep.subr.mxu0 0.0
        %1011 = vmatpush1.xpose.msra.mxu0 0.0
        %1012 = vmatprep.subr.mxu0 0.0
        %1013 = vmatpush1.xpose.msra.mxu0 0.0
        %1014 = vmatprep.subr.mxu0 0.0
        %1015 = vmatpush1.xpose.msra.mxu0 0.0
        %1016 = vmatprep.subr.mxu0 0.0
        %1017 = vmatpush1.xpose.msra.mxu0 0.0
        %1018 = vmatprep.subr.mxu0 0.0
        %1019 = vmatpush1.xpose.msra.mxu0 0.0
        %1020 = vmatprep.subr.mxu0 0.0
        %1021 = vmatpush1.xpose.msra.mxu0 0.0
        %1022 = vmatprep.subr.mxu0 0.0
        %1023 = vmatpush1.xpose.msra.mxu0 0.0
        %1024 = vmatprep.subr.mxu0 0.0
        %1025 = vmatpush1.xpose.msra.mxu0 0.0
        %1026 = vmatprep.subr.mxu0 0.0
        %1027 = vmatpush1.xpose.msra.mxu0 0.0
        %1028 = vmatprep.subr.mxu0 0.0
        %1029 = vmatpush1.xpose.msra.mxu0 0.0
        %1030 = vmatprep.subr.mxu0 0.0
        %1031 = vmatpush1.xpose.msra.mxu0 0.0
        %1032 = vmatprep.subr.mxu0 0.0
        %1033 = vmatpush1.xpose.msra.mxu0 0.0
        %1034 = vmatprep.subr.mxu0 0.0
        %1035 = vmatpush1.xpose.msra.mxu0 0.0
        %1036 = vmatprep.subr.mxu0 0.0
        %1037 = vmatpush1.xpose.msra.mxu0 %v1006
        %1038 = vmatprep.subr.mxu0 0.0
        %1039 = vmatpush1.xpose.msra.mxu0 %v1003
        %1040 = vmatprep.subr.mxu0 0.0
        %1041 = vmatpush2.xpose.msra.mxu0 0.0
        %1042 = vmatprep.subr.mxu0 0.0
        %1043 = vmatpush2.xpose.msra.mxu0 0.0
        %1044 = vmatprep.subr.mxu0 0.0
        %1045 = vmatpush2.xpose.msra.mxu0 0.0
        %1046 = vmatprep.subr.mxu0 0.0
        %1047 = vmatpush2.xpose.msra.mxu0 0.0
        %1048 = vmatprep.subr.mxu0 0.0
        %1049 = vmatpush2.xpose.msra.mxu0 0.0
        %1050 = vmatprep.subr.mxu0 0.0
        %1051 = vmatpush2.xpose.msra.mxu0 0.0
        %1052 = vmatprep.subr.mxu0 0.0
        %1053 = vmatpush2.xpose.msra.mxu0 0.0
        %1054 = vmatprep.subr.mxu0 0.0
        %1055 = vmatpush2.xpose.msra.mxu0 0.0
        %1056 = vmatprep.subr.mxu0 0.0
        %1057 = vmatpush2.xpose.msra.mxu0 0.0
        %1058 = vmatprep.subr.mxu0 0.0
        %1059 = vmatpush2.xpose.msra.mxu0 0.0
        %1060 = vmatprep.subr.mxu0 0.0
        %1061 = vmatpush2.xpose.msra.mxu0 0.0
        %1062 = vmatprep.subr.mxu0 0.0
        %1063 = vmatpush2.xpose.msra.mxu0 0.0
        %1064 = vmatprep.subr.mxu0 0.0
        %1065 = vmatpush2.xpose.msra.mxu0 0.0
        %1066 = vmatprep.subr.mxu0 0.0
        %1067 = vmatpush2.xpose.msra.mxu0 0.0
        %1068 = vmatprep.subr.mxu0 0.0
        %1069 = vmatpush2.xpose.msra.mxu0 0.0
        %1070 = vmatprep.subr.mxu0 0.0
        %1071 = vmatpush2.xpose.msra.mxu0 0.0
        %1072 = vmatprep.mubr.f32.mxu0 0.0
        %1073 = vmatmul.mubr.f32.gmra.mxu0 %v1000
        %v1074 = vpop.f32.mrf.mxu0
        %v1075 = vadd.f32 0.0, %v1074
        %v1076 = vpop.f32.mrf.mxu0
        %1077 = vdwg.mxu0
        %v1078 = vsel %vm730, %v1075, -inf
        %1079 = vmax.xlane.f32.xlu0 %v1078
        %v1080 = vpop.xlane.xlu0 %1079
        %v1081 = vsub.f32 %v1075, %v1080
        %v1082 = vmul.f32 %v1081, 1.442695
        %v1083 = vpow.pop %v1082
        %v1084 = vsel %vm730, %v1083, 0.0
        %1085 = vadd.xlane.f32.xlu0 %v1084
        %v1086 = vpop.xlane.xlu0 %1085
        %v1087 = vrcp.pop %v1086
        %v1088 = vmul.f32 %v1083, %v1087
        %v1090 = vsel %vm730, %v1088, 0
        %1092 = vmatprep.subr.mxu0 0.0
        %1093 = vmatpush1.msra.mxu0 0.0
        %1094 = vmatprep.subr.mxu0 0.0
        %1095 = vmatpush1.msra.mxu0 0.0
        %1096 = vmatprep.subr.mxu0 0.0
        %1097 = vmatpush1.msra.mxu0 0.0
        %1098 = vmatprep.subr.mxu0 0.0
        %1099 = vmatpush1.msra.mxu0 0.0
        %1100 = vmatprep.subr.mxu0 0.0
        %1101 = vmatpush1.msra.mxu0 0.0
        %1102 = vmatprep.subr.mxu0 0.0
        %1103 = vmatpush1.msra.mxu0 0.0
        %1104 = vmatprep.subr.mxu0 0.0
        %1105 = vmatpush1.msra.mxu0 0.0
        %1106 = vmatprep.subr.mxu0 0.0
        %1107 = vmatpush1.msra.mxu0 0.0
        %1108 = vmatprep.subr.mxu0 0.0
        %1109 = vmatpush1.msra.mxu0 0.0
        %1110 = vmatprep.subr.mxu0 0.0
        %1111 = vmatpush1.msra.mxu0 0.0
        %1112 = vmatprep.subr.mxu0 0.0
        %1113 = vmatpush1.msra.mxu0 0.0
        %1114 = vmatprep.subr.mxu0 0.0
        %1115 = vmatpush1.msra.mxu0 0.0
        %1116 = vmatprep.subr.mxu0 0.0
        %1117 = vmatpush1.msra.mxu0 0.0
        %1118 = vmatprep.subr.mxu0 0.0
        %1119 = vmatpush1.msra.mxu0 0.0
        %1120 = vmatprep.subr.mxu0 0.0
        %1121 = vmatpush1.msra.mxu0 %v997
        %1122 = vmatprep.subr.mxu0 0.0
        %1123 = vmatpush1.msra.mxu0 %v996
        %1124 = vmatprep.subr.mxu0 0.0
        %1125 = vmatpush2.msra.mxu0 0.0
        %1126 = vmatprep.subr.mxu0 0.0
        %1127 = vmatpush2.msra.mxu0 0.0
        %1128 = vmatprep.subr.mxu0 0.0
        %1129 = vmatpush2.msra.mxu0 0.0
        %1130 = vmatprep.subr.mxu0 0.0
        %1131 = vmatpush2.msra.mxu0 0.0
        %1132 = vmatprep.subr.mxu0 0.0
        %1133 = vmatpush2.msra.mxu0 0.0
        %1134 = vmatprep.subr.mxu0 0.0
        %1135 = vmatpush2.msra.mxu0 0.0
        %1136 = vmatprep.subr.mxu0 0.0
        %1137 = vmatpush2.msra.mxu0 0.0
        %1138 = vmatprep.subr.mxu0 0.0
        %1139 = vmatpush2.msra.mxu0 0.0
        %1140 = vmatprep.subr.mxu0 0.0
        %1141 = vmatpush2.msra.mxu0 0.0
        %1142 = vmatprep.subr.mxu0 0.0
        %1143 = vmatpush2.msra.mxu0 0.0
        %1144 = vmatprep.subr.mxu0 0.0
        %1145 = vmatpush2.msra.mxu0 0.0
        %1146 = vmatprep.subr.mxu0 0.0
        %1147 = vmatpush2.msra.mxu0 0.0
        %1148 = vmatprep.subr.mxu0 0.0
        %1149 = vmatpush2.msra.mxu0 0.0
        %1150 = vmatprep.subr.mxu0 0.0
        %1151 = vmatpush2.msra.mxu0 0.0
        %1152 = vmatprep.subr.mxu0 0.0
        %1153 = vmatpush2.msra.mxu0 0.0
        %1154 = vmatprep.subr.mxu0 0.0
        %1155 = vmatpush2.msra.mxu0 0.0
        %1156 = vmatprep.mubr.f32.mxu0 0.0
        %1157 = vmatmul.mubr.f32.gmra.mxu0 %v1090
        %v1158 = vpop.f32.mrf.mxu0
        %v1159 = vadd.f32 0.0, %v1158
        %v1160 = vpop.f32.mrf.mxu0
        %1161 = vdwg.mxu0
        %1163 = vrot.lane.b32.xlu0 %v1159, 16
        %v1164 = vpop.permute.xlu0 %1163
        %vm1166 = vcmask 195712
        %1167 = vst.msk [vmem:[#allocation4] sm:$0xff] %vm1166, %v1164
        %s1168 = scalar_lea.vmem [#allocation2], 48
        %v1169 = vld [vmem:[%s1168] sm:$0xff]
        %v1170 = vld [vmem:[%s1168 + $0x8] sm:$0xff]
        %s1171 = scalar_lea.vmem [#allocation3], 48
        %v1172 = vld [vmem:[%s1171] sm:$0xff]
        %v1173 = vld [vmem:[%s1171 + $0x8] sm:$0xff]
        %1174 = vrot.lane.b32.xlu0 %v643, 104
        %v1175 = vpop.permute.xlu0 %1174
        %v1176 = vsel %vm650, %v1175, 0
        %v1179 = vsel %vm650, %v1169, 0
        %v1182 = vsel %vm650, %v1170, 0
        %1184 = vmatprep.subr.mxu0 0.0
        %1185 = vmatpush1.xpose.msra.mxu0 0.0
        %1186 = vmatprep.subr.mxu0 0.0
        %1187 = vmatpush1.xpose.msra.mxu0 0.0
        %1188 = vmatprep.subr.mxu0 0.0
        %1189 = vmatpush1.xpose.msra.mxu0 0.0
        %1190 = vmatprep.subr.mxu0 0.0
        %1191 = vmatpush1.xpose.msra.mxu0 0.0
        %1192 = vmatprep.subr.mxu0 0.0
        %1193 = vmatpush1.xpose.msra.mxu0 0.0
        %1194 = vmatprep.subr.mxu0 0.0
        %1195 = vmatpush1.xpose.msra.mxu0 0.0
        %1196 = vmatprep.subr.mxu0 0.0
        %1197 = vmatpush1.xpose.msra.mxu0 0.0
        %1198 = vmatprep.subr.mxu0 0.0
        %1199 = vmatpush1.xpose.msra.mxu0 0.0
        %1200 = vmatprep.subr.mxu0 0.0
        %1201 = vmatpush1.xpose.msra.mxu0 0.0
        %1202 = vmatprep.subr.mxu0 0.0
        %1203 = vmatpush1.xpose.msra.mxu0 0.0
        %1204 = vmatprep.subr.mxu0 0.0
        %1205 = vmatpush1.xpose.msra.mxu0 0.0
        %1206 = vmatprep.subr.mxu0 0.0
        %1207 = vmatpush1.xpose.msra.mxu0 0.0
        %1208 = vmatprep.subr.mxu0 0.0
        %1209 = vmatpush1.xpose.msra.mxu0 0.0
        %1210 = vmatprep.subr.mxu0 0.0
        %1211 = vmatpush1.xpose.msra.mxu0 0.0
        %1212 = vmatprep.subr.mxu0 0.0
        %1213 = vmatpush1.xpose.msra.mxu0 %v1182
        %1214 = vmatprep.subr.mxu0 0.0
        %1215 = vmatpush1.xpose.msra.mxu0 %v1179
        %1216 = vmatprep.subr.mxu0 0.0
        %1217 = vmatpush2.xpose.msra.mxu0 0.0
        %1218 = vmatprep.subr.mxu0 0.0
        %1219 = vmatpush2.xpose.msra.mxu0 0.0
        %1220 = vmatprep.subr.mxu0 0.0
        %1221 = vmatpush2.xpose.msra.mxu0 0.0
        %1222 = vmatprep.subr.mxu0 0.0
        %1223 = vmatpush2.xpose.msra.mxu0 0.0
        %1224 = vmatprep.subr.mxu0 0.0
        %1225 = vmatpush2.xpose.msra.mxu0 0.0
        %1226 = vmatprep.subr.mxu0 0.0
        %1227 = vmatpush2.xpose.msra.mxu0 0.0
        %1228 = vmatprep.subr.mxu0 0.0
        %1229 = vmatpush2.xpose.msra.mxu0 0.0
        %1230 = vmatprep.subr.mxu0 0.0
        %1231 = vmatpush2.xpose.msra.mxu0 0.0
        %1232 = vmatprep.subr.mxu0 0.0
        %1233 = vmatpush2.xpose.msra.mxu0 0.0
        %1234 = vmatprep.subr.mxu0 0.0
        %1235 = vmatpush2.xpose.msra.mxu0 0.0
        %1236 = vmatprep.subr.mxu0 0.0
        %1237 = vmatpush2.xpose.msra.mxu0 0.0
        %1238 = vmatprep.subr.mxu0 0.0
        %1239 = vmatpush2.xpose.msra.mxu0 0.0
        %1240 = vmatprep.subr.mxu0 0.0
        %1241 = vmatpush2.xpose.msra.mxu0 0.0
        %1242 = vmatprep.subr.mxu0 0.0
        %1243 = vmatpush2.xpose.msra.mxu0 0.0
        %1244 = vmatprep.subr.mxu0 0.0
        %1245 = vmatpush2.xpose.msra.mxu0 0.0
        %1246 = vmatprep.subr.mxu0 0.0
        %1247 = vmatpush2.xpose.msra.mxu0 0.0
        %1248 = vmatprep.mubr.f32.mxu0 0.0
        %1249 = vmatmul.mubr.f32.gmra.mxu0 %v1176
        %v1250 = vpop.f32.mrf.mxu0
        %v1251 = vadd.f32 0.0, %v1250
        %v1252 = vpop.f32.mrf.mxu0
        %1253 = vdwg.mxu0
        %v1254 = vsel %vm730, %v1251, -inf
        %1255 = vmax.xlane.f32.xlu0 %v1254
        %v1256 = vpop.xlane.xlu0 %1255
        %v1257 = vsub.f32 %v1251, %v1256
        %v1258 = vmul.f32 %v1257, 1.442695
        %v1259 = vpow.pop %v1258
        %v1260 = vsel %vm730, %v1259, 0.0
        %1261 = vadd.xlane.f32.xlu0 %v1260
        %v1262 = vpop.xlane.xlu0 %1261
        %v1263 = vrcp.pop %v1262
        %v1264 = vmul.f32 %v1259, %v1263
        %v1266 = vsel %vm730, %v1264, 0
        %1268 = vmatprep.subr.mxu0 0.0
        %1269 = vmatpush1.msra.mxu0 0.0
        %1270 = vmatprep.subr.mxu0 0.0
        %1271 = vmatpush1.msra.mxu0 0.0
        %1272 = vmatprep.subr.mxu0 0.0
        %1273 = vmatpush1.msra.mxu0 0.0
        %1274 = vmatprep.subr.mxu0 0.0
        %1275 = vmatpush1.msra.mxu0 0.0
        %1276 = vmatprep.subr.mxu0 0.0
        %1277 = vmatpush1.msra.mxu0 0.0
        %1278 = vmatprep.subr.mxu0 0.0
        %1279 = vmatpush1.msra.mxu0 0.0
        %1280 = vmatprep.subr.mxu0 0.0
        %1281 = vmatpush1.msra.mxu0 0.0
        %1282 = vmatprep.subr.mxu0 0.0
        %1283 = vmatpush1.msra.mxu0 0.0
        %1284 = vmatprep.subr.mxu0 0.0
        %1285 = vmatpush1.msra.mxu0 0.0
        %1286 = vmatprep.subr.mxu0 0.0
        %1287 = vmatpush1.msra.mxu0 0.0
        %1288 = vmatprep.subr.mxu0 0.0
        %1289 = vmatpush1.msra.mxu0 0.0
        %1290 = vmatprep.subr.mxu0 0.0
        %1291 = vmatpush1.msra.mxu0 0.0
        %1292 = vmatprep.subr.mxu0 0.0
        %1293 = vmatpush1.msra.mxu0 0.0
        %1294 = vmatprep.subr.mxu0 0.0
        %1295 = vmatpush1.msra.mxu0 0.0
        %1296 = vmatprep.subr.mxu0 0.0
        %1297 = vmatpush1.msra.mxu0 %v1173
        %1298 = vmatprep.subr.mxu0 0.0
        %1299 = vmatpush1.msra.mxu0 %v1172
        %1300 = vmatprep.subr.mxu0 0.0
        %1301 = vmatpush2.msra.mxu0 0.0
        %1302 = vmatprep.subr.mxu0 0.0
        %1303 = vmatpush2.msra.mxu0 0.0
        %1304 = vmatprep.subr.mxu0 0.0
        %1305 = vmatpush2.msra.mxu0 0.0
        %1306 = vmatprep.subr.mxu0 0.0
        %1307 = vmatpush2.msra.mxu0 0.0
        %1308 = vmatprep.subr.mxu0 0.0
        %1309 = vmatpush2.msra.mxu0 0.0
        %1310 = vmatprep.subr.mxu0 0.0
        %1311 = vmatpush2.msra.mxu0 0.0
        %1312 = vmatprep.subr.mxu0 0.0
        %1313 = vmatpush2.msra.mxu0 0.0
        %1314 = vmatprep.subr.mxu0 0.0
        %1315 = vmatpush2.msra.mxu0 0.0
        %1316 = vmatprep.subr.mxu0 0.0
        %1317 = vmatpush2.msra.mxu0 0.0
        %1318 = vmatprep.subr.mxu0 0.0
        %1319 = vmatpush2.msra.mxu0 0.0
        %1320 = vmatprep.subr.mxu0 0.0
        %1321 = vmatpush2.msra.mxu0 0.0
        %1322 = vmatprep.subr.mxu0 0.0
        %1323 = vmatpush2.msra.mxu0 0.0
        %1324 = vmatprep.subr.mxu0 0.0
        %1325 = vmatpush2.msra.mxu0 0.0
        %1326 = vmatprep.subr.mxu0 0.0
        %1327 = vmatpush2.msra.mxu0 0.0
        %1328 = vmatprep.subr.mxu0 0.0
        %1329 = vmatpush2.msra.mxu0 0.0
        %1330 = vmatprep.subr.mxu0 0.0
        %1331 = vmatpush2.msra.mxu0 0.0
        %1332 = vmatprep.mubr.f32.mxu0 0.0
        %1333 = vmatmul.mubr.f32.gmra.mxu0 %v1266
        %v1334 = vpop.f32.mrf.mxu0
        %v1335 = vadd.f32 0.0, %v1334
        %v1336 = vpop.f32.mrf.mxu0
        %1337 = vdwg.mxu0
        %1339 = vrot.lane.b32.xlu0 %v1335, 24
        %v1340 = vpop.permute.xlu0 %1339
        %vm1342 = vcmask 261312
        %1343 = vst.msk [vmem:[#allocation4] sm:$0xff] %vm1342, %v1340
        %v1344 = vld [vmem:[#allocation4] sm:$0xff]
        %1345 = vst.msk [vmem:[%s407] sm:$0xff] %vm572, %v1344
        %v1346 = vld [vmem:[#allocation13] sm:$0xff]
        %v1347 = vld [vmem:[#allocation13 + $0x8] sm:$0xff]
        %v1348 = vld [vmem:[#allocation13 + $0x10] sm:$0xff]
        %v1349 = vld [vmem:[#allocation13 + $0x18] sm:$0xff]
        %v1350 = vld [vmem:[%s5] sm:$0x1]
        %v1352 = vlaneseq
        %v1353 = vshrl.u32 %v1352, 7
        %v1354 = vsub.s32 0, %v1353
        %v1355 = vrot.slane %v1350, %v1354
        %v1358 = vsel %vm572, %v1344, 0
        %1360 = vmatprep.subr.mxu0 0.0
        %1361 = vmatpush1.msra.mxu0 0.0
        %1362 = vmatprep.subr.mxu0 0.0
        %1363 = vmatpush1.msra.mxu0 0.0
        %1364 = vmatprep.subr.mxu0 0.0
        %1365 = vmatpush1.msra.mxu0 0.0
        %1366 = vmatprep.subr.mxu0 0.0
        %1367 = vmatpush1.msra.mxu0 0.0
        %1368 = vmatprep.subr.mxu0 0.0
        %1369 = vmatpush1.msra.mxu0 0.0
        %1370 = vmatprep.subr.mxu0 0.0
        %1371 = vmatpush1.msra.mxu0 0.0
        %1372 = vmatprep.subr.mxu0 0.0
        %1373 = vmatpush1.msra.mxu0 0.0
        %1374 = vmatprep.subr.mxu0 0.0
        %1375 = vmatpush1.msra.mxu0 0.0
        %1376 = vmatprep.subr.mxu0 0.0
        %1377 = vmatpush1.msra.mxu0 0.0
        %1378 = vmatprep.subr.mxu0 0.0
        %1379 = vmatpush1.msra.mxu0 0.0
        %1380 = vmatprep.subr.mxu0 0.0
        %1381 = vmatpush1.msra.mxu0 0.0
        %1382 = vmatprep.subr.mxu0 0.0
        %1383 = vmatpush1.msra.mxu0 0.0
        %1384 = vmatprep.subr.mxu0 0.0
        %1385 = vmatpush1.msra.mxu0 %v1349
        %1386 = vmatprep.subr.mxu0 0.0
        %1387 = vmatpush1.msra.mxu0 %v1348
        %1388 = vmatprep.subr.mxu0 0.0
        %1389 = vmatpush1.msra.mxu0 %v1347
        %1390 = vmatprep.subr.mxu0 0.0
        %1391 = vmatpush1.msra.mxu0 %v1346
        %1392 = vmatprep.subr.mxu0 0.0
        %1393 = vmatpush2.msra.mxu0 0.0
        %1394 = vmatprep.subr.mxu0 0.0
        %1395 = vmatpush2.msra.mxu0 0.0
        %1396 = vmatprep.subr.mxu0 0.0
        %1397 = vmatpush2.msra.mxu0 0.0
        %1398 = vmatprep.subr.mxu0 0.0
        %1399 = vmatpush2.msra.mxu0 0.0
        %1400 = vmatprep.subr.mxu0 0.0
        %1401 = vmatpush2.msra.mxu0 0.0
        %1402 = vmatprep.subr.mxu0 0.0
        %1403 = vmatpush2.msra.mxu0 0.0
        %1404 = vmatprep.subr.mxu0 0.0
        %1405 = vmatpush2.msra.mxu0 0.0
        %1406 = vmatprep.subr.mxu0 0.0
        %1407 = vmatpush2.msra.mxu0 0.0
        %1408 = vmatprep.subr.mxu0 0.0
        %1409 = vmatpush2.msra.mxu0 0.0
        %1410 = vmatprep.subr.mxu0 0.0
        %1411 = vmatpush2.msra.mxu0 0.0
        %1412 = vmatprep.subr.mxu0 0.0
        %1413 = vmatpush2.msra.mxu0 0.0
        %1414 = vmatprep.subr.mxu0 0.0
        %1415 = vmatpush2.msra.mxu0 0.0
        %1416 = vmatprep.subr.mxu0 0.0
        %1417 = vmatpush2.msra.mxu0 0.0
        %1418 = vmatprep.subr.mxu0 0.0
        %1419 = vmatpush2.msra.mxu0 0.0
        %1420 = vmatprep.subr.mxu0 0.0
        %1421 = vmatpush2.msra.mxu0 0.0
        %1422 = vmatprep.subr.mxu0 0.0
        %1423 = vmatpush2.msra.mxu0 0.0
        %1424 = vmatprep.mubr.f32.mxu0 0.0
        %1425 = vmatmul.mubr.f32.gmra.mxu0 %v1358
        %v1426 = vpop.f32.mrf.mxu0
        %v1427 = vadd.f32 %v1355, %v1426
        %v1428 = vpop.f32.mrf.mxu0
        %1429 = vdwg.mxu0
        %1430 = vst.msk [vmem:[%s400] sm:$0xff] %vm572, %v1427
        %s1431 = sand.u32 %s192, 1
        %s1432 = scalar_lea.sflag [#allocation7], %s1431
        %s1433 = sand.u32 %s192, 1
        %s1434 = smul.addr %s1433, 8
        %s1435 = scalar_lea.vmem [#allocation14], %s1434
        %s1436 = sand.u32 %s220, 1
        %s1437 = scalar_lea.sflag [#allocation16], %s1436
        %s1438 = sand.u32 %s220, 1
        %s1439 = smul.addr %s1438, 8
        %s1440 = scalar_lea.vmem [#allocation15], %s1439
        // Predicated region
        $region69: #{tpu_custom_call.1} parent=43 // pred_check
          %p1441 = pneg %p202
        $region70: #{tpu_custom_call.1} parent=43 // pred_check_branch
          %1443 = sbr.rel (%p1441) target = $region72
        $region71: #{tpu_custom_call.1} parent=43 // pred_region
          %s1445 = ssub.s32 128, 128
          %1446 = vsyncadd %s1432, %s1445
          %s1447 = smul.addr %s36, 2
          %s1448 = sadd.s32 %s37, %s1447
          %s1449 = smul.addr %s1448, 128
          %s1450 = scalar_lea.hbm %s6, %s1449
          %s1452 = sshll.u32 %s1435, 4
          %s1453 = int_to_ptr.vmem [resolvable:$true] %s1452
          %1455 = dma.vmem_to_hbm [thread:$0]  %s1453, 128, %s1450, %s1432
        $region72: #{tpu_custom_call.1} parent=43 // pred_fallthru
          _
        // Predicated region
        $region73: #{tpu_custom_call.1} parent=43 // pred_check
          %p1456 = pneg %p230
        $region74: #{tpu_custom_call.1} parent=43 // pred_check_branch
          %1458 = sbr.rel (%p1456) target = $region76
        $region75: #{tpu_custom_call.1} parent=43 // pred_region
          %s1460 = ssub.s32 128, 128
          %1461 = vsyncadd %s1437, %s1460
          %s1462 = smul.addr %s36, 2
          %s1463 = sadd.s32 %s37, %s1462
          %s1464 = smul.addr %s1463, 128
          %s1465 = scalar_lea.hbm %s7, %s1464
          %s1467 = sshll.u32 %s1440, 4
          %s1468 = int_to_ptr.vmem [resolvable:$true] %s1467
          %1470 = dma.vmem_to_hbm [thread:$0]  %s1468, 128, %s1465, %s1437
        $region76: #{tpu_custom_call.1} parent=43 // pred_fallthru
          _
      $region44: #{tpu_custom_call.1} parent=5 // pred_fallthru
        _
      %p1471 = scmp.le.s32.totalorder 2, %s27
      // Predicated region
      $region77: #{tpu_custom_call.1} parent=5 // pred_check
        %p1472 = pneg %p1471
      $region78: #{tpu_custom_call.1} parent=5 // pred_check_branch
        %1474 = sbr.rel (%p1472) target = $region80
      $region79: #{tpu_custom_call.1} parent=5 // pred_region
        %s1475 = ssub.s32 %s27, 2
        // Predicated region
        $region81: #{tpu_custom_call.1} parent=79 // pred_check
          %p1476 = pneg %p208
        $region82: #{tpu_custom_call.1} parent=79 // pred_check_branch
          %1478 = sbr.rel (%p1476) target = $region84
        $region83: #{tpu_custom_call.1} parent=79 // pred_region
          %s1479 = sand.u32 %s193, 1
          %s1480 = scalar_lea.sflag [#allocation7], %s1479
          %s1481 = sand.u32 %s193, 1
          %s1482 = smul.addr %s1481, 8
          %s1483 = scalar_lea.vmem [#allocation14], %s1482
          %1484 = dma.done %s1480, 128
        $region84: #{tpu_custom_call.1} parent=79 // pred_fallthru
          _
        // Predicated region
        $region85: #{tpu_custom_call.1} parent=79 // pred_check
          %p1485 = pneg %p236
        $region86: #{tpu_custom_call.1} parent=79 // pred_check_branch
          %1487 = sbr.rel (%p1485) target = $region88
        $region87: #{tpu_custom_call.1} parent=79 // pred_region
          %s1488 = sand.u32 %s221, 1
          %s1489 = scalar_lea.sflag [#allocation16], %s1488
          %s1490 = sand.u32 %s221, 1
          %s1491 = smul.addr %s1490, 8
          %s1492 = scalar_lea.vmem [#allocation15], %s1491
          %1493 = dma.done %s1489, 128
        $region88: #{tpu_custom_call.1} parent=79 // pred_fallthru
          _
      $region80: #{tpu_custom_call.1} parent=5 // pred_fallthru
        _
    $region6: #{tpu_custom_call.1} parent=1 // loop_footer
      %s31 = sadd.s32 1, %s27
    $region7: #{tpu_custom_call.1} parent=1 // loop_footer_branch
      %26 = sbr.rel target = $region3
    $region8: #{tpu_custom_call.1} parent=1 // loop_exit
      _
    %1494 = vsyncpa [#allocation6], 1
    %s1495 = scalar_lea.sflag [#allocation6], 1
    %1496 = vsyncpa %s1495, 1
    %1497 = vsyncpa [#allocation9], 1
    %s1498 = scalar_lea.sflag [#allocation9], 1
    %1499 = vsyncpa %s1498, 1
    %1500 = vsyncpa [#allocation12], 1
    %1501 = vsyncpa [#allocation7], 1
    %s1502 = scalar_lea.sflag [#allocation7], 1
    %1503 = vsyncpa %s1502, 1
    %1504 = vsyncpa [#allocation16], 1
    %s1505 = scalar_lea.sflag [#allocation16], 1
    %1506 = vsyncpa %s1505, 1

</llo_original>
